<compile_context>
chip_gen: v7x
topology: tpu7x:2x2x1
jax: 0.10.0
libtpu: 0.0.40
codegen_flags: <defaults>
</compile_context>

<pallas_src>
import functools

import jax
import jax.numpy as jnp
from jax.experimental import pallas as pl
from jax.experimental.pallas import tpu as pltpu

BN_EPS = 1e-5
SIM_COEFF = 25.0   # args.sim_coeff
STD_COEFF = 25.0   # args.std_coeff
COV_COEFF = 1.0    # args.cov_coeff


def _bf16_dot(a, b):
    """MXU matmul: bf16 operands, f32 accumulation."""
    return jnp.dot(a.astype(jnp.bfloat16), b.astype(jnp.bfloat16),
                   preferred_element_type=jnp.float32)


def _bn_train(h, gamma, beta):
    """nn.BatchNorm1d in training mode: biased batch var, eps=1e-5."""
    mu = jnp.mean(h, axis=0, keepdims=True)
    var = jnp.mean((h - mu) ** 2, axis=0, keepdims=True)
    return (h - mu) * jax.lax.rsqrt(var + BN_EPS) * gamma + beta


def _branch(rows, g1, b1, w1t, lb1, g2, b2, wbb, bbb, n_per_sample):
    """x/y_transform + backbone stand-in.  rows: (B*N, C_in) -> (B, Do)."""
    # ---- BN1 folded into Linear1: only the stats reductions read `rows` ----
    mu1 = jnp.mean(rows, axis=0, keepdims=True)                      # (1, C)
    var1 = jnp.mean((rows - mu1) ** 2, axis=0, keepdims=True)        # (1, C)
    scale1 = g1 * jax.lax.rsqrt(var1 + BN_EPS)                       # (1, C)
    shift1 = b1 - mu1 * scale1                                       # (1, C)
    w1t_eff = w1t * scale1                                           # (T, C)
    dn_tb = (((1,), (1,)), ((), ()))                                 # A @ B.T
    bias1 = jax.lax.dot_general(shift1, w1t, dn_tb,
                                preferred_element_type=jnp.float32) + lb1  # (1, T)
    h = jax.lax.dot_general(rows.astype(jnp.bfloat16),
                            w1t_eff.astype(jnp.bfloat16), dn_tb,
                            preferred_element_type=jnp.float32) + bias1    # (M, T)
    # ---- BN2 + ReLU (elementwise pass unavoidable: ReLU is nonlinear) ----
    h = jnp.maximum(_bn_train(h, g2, b2), 0.0)
    # ---- backbone stand-in: per-sample mean over N, then Linear(T -> Do) ----
    # TODO(synk): the real backbone is user-provided (args.x_backbone /
    # args.y_backbone); a mean-pool + Linear stand-in is used here.
    batch = rows.shape[0] // n_per_sample
    z = jnp.concatenate(
        [jnp.mean(h[i * n_per_sample:(i + 1) * n_per_sample, :],
                  axis=0, keepdims=True) for i in range(batch)],
        axis=0)                                                      # (B, T)
    return _bf16_dot(z, wbb) + bbb                                   # (B, Do)


def _projector(z, wp1, bp1, gp, bp, wp2):
    """Projector (mlp="H1-F"): Linear -> BN -> ReLU -> Linear(no bias)."""
    p = _bf16_dot(z, wp1) + bp1
    p = jnp.maximum(_bn_train(p, gp, bp), 0.0)
    return _bf16_dot(p, wp2)                                         # (B, F)


def _vicreg_loss(zx, zy):
    batch = zx.shape[0]
    nfeat = zx.shape[1]
    # repr_loss = F.mse_loss(x, y)
    repr_loss = jnp.mean((zx - zy) ** 2)
    # center (no redundant re-centering later)
    xc = zx - jnp.mean(zx, axis=0, keepdims=True)
    yc = zy - jnp.mean(zy, axis=0, keepdims=True)
    # std loss: torch .var(dim=0) is unbiased -> /(B-1)
    var_x = jnp.sum(xc * xc, axis=0, keepdims=True) / (batch - 1)
    var_y = jnp.sum(yc * yc, axis=0, keepdims=True) / (batch - 1)
    std_loss = (jnp.mean(jnp.maximum(1.0 - jnp.sqrt(var_x + 1e-4), 0.0)) / 2.0
                + jnp.mean(jnp.maximum(1.0 - jnp.sqrt(var_y + 1e-4), 0.0)) / 2.0)
    # cov loss: sum of squared off-diagonals of x.T @ x / (batch - 1).
    # Diagonal recovered from a per-feature column reduce (no iota masks).
    xb = xc.astype(jnp.bfloat16)
    yb = yc.astype(jnp.bfloat16)
    dn_cov = (((0,), (0,)), ((), ()))                       # contract batch dim
    cov_x = jax.lax.dot_general(xb, xb, dn_cov,
                                preferred_element_type=jnp.float32) / (batch - 1)
    cov_y = jax.lax.dot_general(yb, yb, dn_cov,
                                preferred_element_type=jnp.float32) / (batch - 1)
    diag_x = jnp.sum(jnp.square(xb.astype(jnp.float32)),
                     axis=0, keepdims=True) / (batch - 1)
    diag_y = jnp.sum(jnp.square(yb.astype(jnp.float32)),
                     axis=0, keepdims=True) / (batch - 1)
    off_x = jnp.sum(cov_x * cov_x) - jnp.sum(diag_x * diag_x)
    off_y = jnp.sum(cov_y * cov_y) - jnp.sum(diag_y * diag_y)
    cov_loss = off_x / nfeat + off_y / nfeat
    return SIM_COEFF * repr_loss + STD_COEFF * std_loss + COV_COEFF * cov_loss


def _vicreg_kernel(n_x, n_y,
                   rows_x_ref, rows_y_ref,
                   xg1, xb1, xw1t, xlb1, xg2, xb2, xwbb, xbbb,
                   yg1, yb1, yw1t, ylb1, yg2, yb2, ywbb, ybbb,
                   wp1, bp1, gp, bp, wp2,
                   loss_ref):
    zx = _branch(rows_x_ref[...], xg1[...], xb1[...], xw1t[...], xlb1[...],
                 xg2[...], xb2[...], xwbb[...], xbbb[...], n_x)
    zy = _branch(rows_y_ref[...], yg1[...], yb1[...], yw1t[...], ylb1[...],
                 yg2[...], yb2[...], ywbb[...], ybbb[...], n_y)
    zx = _projector(zx, wp1[...], bp1[...], gp[...], bp[...], wp2[...])
    zy = _projector(zy, wp1[...], bp1[...], gp[...], bp[...], wp2[...])
    loss_ref[0, 0] = _vicreg_loss(zx, zy)


def vicreg_forward(x, y, params_x, params_y, params_proj):
    """x: (B, x_inputs, N_x), y: (B, y_inputs, N_y) -- channels-first."""
    B, Cx, Nx = x.shape
    _, Cy, Ny = y.shape
    # channels-first -> (B*N, C) rows, matching
    # `x.transpose(-1, -2).contiguous().view(-1, C)` in the PyTorch forward.
    # TODO(synk): at large B*N this transpose could be folded into the kernel
    # (load (B, C, N) blocks + batched dot_general) to save one HBM pass.
    rows_x = jnp.transpose(x, (0, 2, 1)).reshape(B * Nx, Cx)
    rows_y = jnp.transpose(y, (0, 2, 1)).reshape(B * Ny, Cy)

    def pset(p):
        return (p["g1"], p["b1"], p["w1t"], p["lb1"],
                p["g2"], p["b2"], p["wbb"], p["bbb"])

    proj = (params_proj["wp1"], params_proj["bp1"], params_proj["gp"],
            params_proj["bp"], params_proj["wp2"])
    args = (rows_x, rows_y) + pset(params_x) + pset(params_y) + proj

    T = params_x["w1t"].shape[0]
    Do = params_x["wbb"].shape[1]
    H1 = params_proj["wp1"].shape[1]
    Fdim = params_proj["wp2"].shape[1]
    flops = int(2 * (B * Nx * Cx * T + B * Ny * Cy * T
                     + 2 * B * T * Do + 2 * B * Do * H1 + 2 * B * H1 * Fdim
                     + 2 * B * Fdim * Fdim))
    bytes_accessed = int(4 * (sum(int(a.size) for a in args) + 1))
    transcendentals = int(Cx + Cy + 2 * T + 2 * H1 + 2 * Fdim)

    loss = pl.pallas_call(
        functools.partial(_vicreg_kernel, Nx, Ny),
        out_shape=jax.ShapeDtypeStruct((1, 1), jnp.float32),
        in_specs=[pl.BlockSpec(memory_space=pltpu.MemorySpace.VMEM)] * len(args),
        out_specs=pl.BlockSpec(memory_space=pltpu.MemorySpace.SMEM),
        compiler_params=pltpu.CompilerParams(
            vmem_limit_bytes=48 * 1024 * 1024),
        cost_estimate=pl.CostEstimate(flops=flops,
                                      transcendentals=transcendentals,
                                      bytes_accessed=bytes_accessed),
    )(*args)
    return loss[0, 0]


if __name__ == "__main__":
    # small, VICReg-consistent shapes
    B = 4                  # args.batch_size
    x_inputs, N_x = 8, 8   # x: (B, x_inputs, N_x)
    y_inputs, N_y = 16, 8  # y: (B, y_inputs, N_y)
    T = 16                 # args.transform_inputs
    Do = 32                # args.Do (embedding)
    H1, F = 32, 32         # args.mlp = "32-32" -> num_features = 32

    key = jax.random.PRNGKey(0)
    ks = jax.random.split(key, 8)

    def lin(k, fan_in, fan_out):
        return jax.random.normal(k, (fan_in, fan_out), jnp.float32) / jnp.sqrt(
            jnp.float32(fan_in))

    # shared projector (args.shared = True)
    params_proj = dict(
        wp1=lin(ks[0], Do, H1), bp1=jnp.zeros((1, H1), jnp.float32),
        gp=jnp.ones((1, H1), jnp.float32), bp=jnp.zeros((1, H1), jnp.float32),
        wp2=lin(ks[1], H1, F),
    )
    params_x = dict(
        g1=jnp.ones((1, x_inputs), jnp.float32),
        b1=jnp.zeros((1, x_inputs), jnp.float32),
        w1t=jnp.transpose(lin(ks[2], x_inputs, T)),   # stored (T, C_in)
        lb1=jnp.zeros((1, T), jnp.float32),
        g2=jnp.ones((1, T), jnp.float32), b2=jnp.zeros((1, T), jnp.float32),
        wbb=lin(ks[3], T, Do), bbb=jnp.zeros((1, Do), jnp.float32),
    )
    params_y = dict(
        g1=jnp.ones((1, y_inputs), jnp.float32),
        b1=jnp.zeros((1, y_inputs), jnp.float32),
        w1t=jnp.transpose(lin(ks[4], y_inputs, T)),   # stored (T, C_in)
        lb1=jnp.zeros((1, T), jnp.float32),
        g2=jnp.ones((1, T), jnp.float32), b2=jnp.zeros((1, T), jnp.float32),
        wbb=lin(ks[5], T, Do), bbb=jnp.zeros((1, Do), jnp.float32),
    )

    x = jax.random.normal(ks[6], (B, x_inputs, N_x), jnp.float32)
    y = jax.random.normal(ks[7], (B, y_inputs, N_y), jnp.float32)

    loss = vicreg_forward(x, y, params_x, params_y, params_proj)
    loss = jax.block_until_ready(loss)
    assert jnp.isfinite(loss)
    print("KERNEL_OK")
</pallas_src>

<mosaic_0001>
module attributes {stable_mosaic.version = 11 : i64} {
  func.func @_vicreg_kernel(%arg0: memref<32x8xf32, #tpu.memory_space<vmem>>, %arg1: memref<32x16xf32, #tpu.memory_space<vmem>>, %arg2: memref<1x8xf32, #tpu.memory_space<vmem>>, %arg3: memref<1x8xf32, #tpu.memory_space<vmem>>, %arg4: memref<16x8xf32, #tpu.memory_space<vmem>>, %arg5: memref<1x16xf32, #tpu.memory_space<vmem>>, %arg6: memref<1x16xf32, #tpu.memory_space<vmem>>, %arg7: memref<1x16xf32, #tpu.memory_space<vmem>>, %arg8: memref<16x32xf32, #tpu.memory_space<vmem>>, %arg9: memref<1x32xf32, #tpu.memory_space<vmem>>, %arg10: memref<1x16xf32, #tpu.memory_space<vmem>>, %arg11: memref<1x16xf32, #tpu.memory_space<vmem>>, %arg12: memref<16x16xf32, #tpu.memory_space<vmem>>, %arg13: memref<1x16xf32, #tpu.memory_space<vmem>>, %arg14: memref<1x16xf32, #tpu.memory_space<vmem>>, %arg15: memref<1x16xf32, #tpu.memory_space<vmem>>, %arg16: memref<16x32xf32, #tpu.memory_space<vmem>>, %arg17: memref<1x32xf32, #tpu.memory_space<vmem>>, %arg18: memref<32x32xf32, #tpu.memory_space<vmem>>, %arg19: memref<1x32xf32, #tpu.memory_space<vmem>>, %arg20: memref<1x32xf32, #tpu.memory_space<vmem>>, %arg21: memref<1x32xf32, #tpu.memory_space<vmem>>, %arg22: memref<32x32xf32, #tpu.memory_space<vmem>>, %arg23: memref<1x1xf32, #tpu.memory_space<smem>>) attributes {dimension_semantics = [], scalar_prefetch = 0 : i64, scratch_operands = 0 : i64, tpu.core_type = #tpu.core_type<tc>} {
    %c0 = arith.constant 0 : index
    %c0_0 = arith.constant 0 : index
    %0 = vector.load %arg0[%c0, %c0_0] : memref<32x8xf32, #tpu.memory_space<vmem>>, vector<32x8xf32>
    %c0_1 = arith.constant 0 : index
    %c0_2 = arith.constant 0 : index
    %1 = vector.load %arg2[%c0_1, %c0_2] : memref<1x8xf32, #tpu.memory_space<vmem>>, vector<1x8xf32>
    %c0_3 = arith.constant 0 : index
    %c0_4 = arith.constant 0 : index
    %2 = vector.load %arg3[%c0_3, %c0_4] : memref<1x8xf32, #tpu.memory_space<vmem>>, vector<1x8xf32>
    %c0_5 = arith.constant 0 : index
    %c0_6 = arith.constant 0 : index
    %3 = vector.load %arg4[%c0_5, %c0_6] : memref<16x8xf32, #tpu.memory_space<vmem>>, vector<16x8xf32>
    %c0_7 = arith.constant 0 : index
    %c0_8 = arith.constant 0 : index
    %4 = vector.load %arg5[%c0_7, %c0_8] : memref<1x16xf32, #tpu.memory_space<vmem>>, vector<1x16xf32>
    %c0_9 = arith.constant 0 : index
    %c0_10 = arith.constant 0 : index
    %5 = vector.load %arg6[%c0_9, %c0_10] : memref<1x16xf32, #tpu.memory_space<vmem>>, vector<1x16xf32>
    %c0_11 = arith.constant 0 : index
    %c0_12 = arith.constant 0 : index
    %6 = vector.load %arg7[%c0_11, %c0_12] : memref<1x16xf32, #tpu.memory_space<vmem>>, vector<1x16xf32>
    %c0_13 = arith.constant 0 : index
    %c0_14 = arith.constant 0 : index
    %7 = vector.load %arg8[%c0_13, %c0_14] : memref<16x32xf32, #tpu.memory_space<vmem>>, vector<16x32xf32>
    %c0_15 = arith.constant 0 : index
    %c0_16 = arith.constant 0 : index
    %8 = vector.load %arg9[%c0_15, %c0_16] : memref<1x32xf32, #tpu.memory_space<vmem>>, vector<1x32xf32>
    %cst = arith.constant dense<0.000000e+00> : vector<8xf32>
    %9 = vector.multi_reduction <add>, %0, %cst [0] : vector<32x8xf32> to vector<8xf32>
    %10 = vector.shape_cast %9 : vector<8xf32> to vector<1x8xf32>
    %cst_17 = arith.constant 3.200000e+01 : f32
    %11 = vector.broadcast %cst_17 : f32 to vector<1x8xf32>
    %12 = arith.divf %10, %11 : vector<1x8xf32>
    %13 = vector.broadcast %12 : vector<1x8xf32> to vector<32x8xf32>
    %14 = arith.subf %0, %13 : vector<32x8xf32>
    %15 = arith.mulf %14, %14 : vector<32x8xf32>
    %cst_18 = arith.constant dense<0.000000e+00> : vector<8xf32>
    %16 = vector.multi_reduction <add>, %15, %cst_18 [0] : vector<32x8xf32> to vector<8xf32>
    %17 = vector.shape_cast %16 : vector<8xf32> to vector<1x8xf32>
    %cst_19 = arith.constant 3.200000e+01 : f32
    %18 = vector.broadcast %cst_19 : f32 to vector<1x8xf32>
    %19 = arith.divf %17, %18 : vector<1x8xf32>
    %cst_20 = arith.constant 9.99999974E-6 : f32
    %20 = vector.broadcast %cst_20 : f32 to vector<1x8xf32>
    %21 = arith.addf %19, %20 : vector<1x8xf32>
    %22 = math.rsqrt %21 : vector<1x8xf32>
    %23 = arith.mulf %1, %22 : vector<1x8xf32>
    %24 = arith.mulf %12, %23 : vector<1x8xf32>
    %25 = arith.subf %2, %24 : vector<1x8xf32>
    %26 = vector.broadcast %23 : vector<1x8xf32> to vector<16x8xf32>
    %27 = arith.mulf %3, %26 : vector<16x8xf32>
    %cst_21 = arith.constant dense<0.000000e+00> : vector<1x16xf32>
    %28 = tpu.matmul %25, %3, %cst_21 {dimension_numbers = #tpu.dot_dimension_numbers<[1], [1], [0], [0], [0, 0, 1, 0], [], []>} : vector<1x8xf32>, vector<16x8xf32>, vector<1x16xf32> -> vector<1x16xf32>
    %29 = arith.addf %28, %4 : vector<1x16xf32>
    %30 = arith.truncf %0 : vector<32x8xf32> to vector<32x8xbf16>
    %31 = arith.truncf %27 : vector<16x8xf32> to vector<16x8xbf16>
    %cst_22 = arith.constant dense<0.000000e+00> : vector<32x16xf32>
    %32 = tpu.matmul %30, %31, %cst_22 {dimension_numbers = #tpu.dot_dimension_numbers<[1], [1], [0], [0], [0, 0, 1, 0], [], []>} : vector<32x8xbf16>, vector<16x8xbf16>, vector<32x16xf32> -> vector<32x16xf32>
    %33 = vector.broadcast %29 : vector<1x16xf32> to vector<32x16xf32>
    %34 = arith.addf %32, %33 : vector<32x16xf32>
    %cst_23 = arith.constant dense<0.000000e+00> : vector<16xf32>
    %35 = vector.multi_reduction <add>, %34, %cst_23 [0] : vector<32x16xf32> to vector<16xf32>
    %36 = vector.shape_cast %35 : vector<16xf32> to vector<1x16xf32>
    %cst_24 = arith.constant 3.200000e+01 : f32
    %37 = vector.broadcast %cst_24 : f32 to vector<1x16xf32>
    %38 = arith.divf %36, %37 : vector<1x16xf32>
    %39 = vector.broadcast %38 : vector<1x16xf32> to vector<32x16xf32>
    %40 = arith.subf %34, %39 : vector<32x16xf32>
    %41 = arith.mulf %40, %40 : vector<32x16xf32>
    %cst_25 = arith.constant dense<0.000000e+00> : vector<16xf32>
    %42 = vector.multi_reduction <add>, %41, %cst_25 [0] : vector<32x16xf32> to vector<16xf32>
    %43 = vector.shape_cast %42 : vector<16xf32> to vector<1x16xf32>
    %cst_26 = arith.constant 3.200000e+01 : f32
    %44 = vector.broadcast %cst_26 : f32 to vector<1x16xf32>
    %45 = arith.divf %43, %44 : vector<1x16xf32>
    %46 = vector.broadcast %38 : vector<1x16xf32> to vector<32x16xf32>
    %47 = arith.subf %34, %46 : vector<32x16xf32>
    %cst_27 = arith.constant 9.99999974E-6 : f32
    %48 = vector.broadcast %cst_27 : f32 to vector<1x16xf32>
    %49 = arith.addf %45, %48 : vector<1x16xf32>
    %50 = math.rsqrt %49 : vector<1x16xf32>
    %51 = vector.broadcast %50 : vector<1x16xf32> to vector<32x16xf32>
    %52 = arith.mulf %47, %51 : vector<32x16xf32>
    %53 = vector.broadcast %5 : vector<1x16xf32> to vector<32x16xf32>
    %54 = arith.mulf %52, %53 : vector<32x16xf32>
    %55 = vector.broadcast %6 : vector<1x16xf32> to vector<32x16xf32>
    %56 = arith.addf %54, %55 : vector<32x16xf32>
    %cst_28 = arith.constant 0.000000e+00 : f32
    %57 = vector.broadcast %cst_28 : f32 to vector<32x16xf32>
    %58 = arith.maximumf %56, %57 : vector<32x16xf32>
    %59 = vector.extract_strided_slice %58 {offsets = [0, 0], sizes = [8, 16], strides = [1, 1]} : vector<32x16xf32> to vector<8x16xf32>
    %cst_29 = arith.constant dense<0.000000e+00> : vector<16xf32>
    %60 = vector.multi_reduction <add>, %59, %cst_29 [0] : vector<8x16xf32> to vector<16xf32>
    %61 = vector.shape_cast %60 : vector<16xf32> to vector<1x16xf32>
    %cst_30 = arith.constant 8.000000e+00 : f32
    %62 = vector.broadcast %cst_30 : f32 to vector<1x16xf32>
    %63 = arith.divf %61, %62 : vector<1x16xf32>
    %64 = vector.extract_strided_slice %58 {offsets = [8, 0], sizes = [8, 16], strides = [1, 1]} : vector<32x16xf32> to vector<8x16xf32>
    %cst_31 = arith.constant dense<0.000000e+00> : vector<16xf32>
    %65 = vector.multi_reduction <add>, %64, %cst_31 [0] : vector<8x16xf32> to vector<16xf32>
    %66 = vector.shape_cast %65 : vector<16xf32> to vector<1x16xf32>
    %cst_32 = arith.constant 8.000000e+00 : f32
    %67 = vector.broadcast %cst_32 : f32 to vector<1x16xf32>
    %68 = arith.divf %66, %67 : vector<1x16xf32>
    %69 = vector.extract_strided_slice %58 {offsets = [16, 0], sizes = [8, 16], strides = [1, 1]} : vector<32x16xf32> to vector<8x16xf32>
    %cst_33 = arith.constant dense<0.000000e+00> : vector<16xf32>
    %70 = vector.multi_reduction <add>, %69, %cst_33 [0] : vector<8x16xf32> to vector<16xf32>
    %71 = vector.shape_cast %70 : vector<16xf32> to vector<1x16xf32>
    %cst_34 = arith.constant 8.000000e+00 : f32
    %72 = vector.broadcast %cst_34 : f32 to vector<1x16xf32>
    %73 = arith.divf %71, %72 : vector<1x16xf32>
    %74 = vector.extract_strided_slice %58 {offsets = [24, 0], sizes = [8, 16], strides = [1, 1]} : vector<32x16xf32> to vector<8x16xf32>
    %cst_35 = arith.constant dense<0.000000e+00> : vector<16xf32>
    %75 = vector.multi_reduction <add>, %74, %cst_35 [0] : vector<8x16xf32> to vector<16xf32>
    %76 = vector.shape_cast %75 : vector<16xf32> to vector<1x16xf32>
    %cst_36 = arith.constant 8.000000e+00 : f32
    %77 = vector.broadcast %cst_36 : f32 to vector<1x16xf32>
    %78 = arith.divf %76, %77 : vector<1x16xf32>
    %79 = tpu.concatenate %63, %68, %73, %78 in 0 : vector<1x16xf32>, vector<1x16xf32>, vector<1x16xf32>, vector<1x16xf32> -> vector<4x16xf32>
    %80 = arith.truncf %79 : vector<4x16xf32> to vector<4x16xbf16>
    %81 = arith.truncf %7 : vector<16x32xf32> to vector<16x32xbf16>
    %cst_37 = arith.constant dense<0.000000e+00> : vector<4x32xf32>
    %82 = tpu.matmul %80, %81, %cst_37 {dimension_numbers = #tpu.dot_dimension_numbers<[1], [0], [0], [1], [0, 0, 1, 1], [], []>} : vector<4x16xbf16>, vector<16x32xbf16>, vector<4x32xf32> -> vector<4x32xf32>
    %83 = vector.broadcast %8 : vector<1x32xf32> to vector<4x32xf32>
    %84 = arith.addf %82, %83 : vector<4x32xf32>
    %c0_38 = arith.constant 0 : index
    %c0_39 = arith.constant 0 : index
    %85 = vector.load %arg1[%c0_38, %c0_39] : memref<32x16xf32, #tpu.memory_space<vmem>>, vector<32x16xf32>
    %c0_40 = arith.constant 0 : index
    %c0_41 = arith.constant 0 : index
    %86 = vector.load %arg10[%c0_40, %c0_41] : memref<1x16xf32, #tpu.memory_space<vmem>>, vector<1x16xf32>
    %c0_42 = arith.constant 0 : index
    %c0_43 = arith.constant 0 : index
    %87 = vector.load %arg11[%c0_42, %c0_43] : memref<1x16xf32, #tpu.memory_space<vmem>>, vector<1x16xf32>
    %c0_44 = arith.constant 0 : index
    %c0_45 = arith.constant 0 : index
    %88 = vector.load %arg12[%c0_44, %c0_45] : memref<16x16xf32, #tpu.memory_space<vmem>>, vector<16x16xf32>
    %c0_46 = arith.constant 0 : index
    %c0_47 = arith.constant 0 : index
    %89 = vector.load %arg13[%c0_46, %c0_47] : memref<1x16xf32, #tpu.memory_space<vmem>>, vector<1x16xf32>
    %c0_48 = arith.constant 0 : index
    %c0_49 = arith.constant 0 : index
    %90 = vector.load %arg14[%c0_48, %c0_49] : memref<1x16xf32, #tpu.memory_space<vmem>>, vector<1x16xf32>
    %c0_50 = arith.constant 0 : index
    %c0_51 = arith.constant 0 : index
    %91 = vector.load %arg15[%c0_50, %c0_51] : memref<1x16xf32, #tpu.memory_space<vmem>>, vector<1x16xf32>
    %c0_52 = arith.constant 0 : index
    %c0_53 = arith.constant 0 : index
    %92 = vector.load %arg16[%c0_52, %c0_53] : memref<16x32xf32, #tpu.memory_space<vmem>>, vector<16x32xf32>
    %c0_54 = arith.constant 0 : index
    %c0_55 = arith.constant 0 : index
    %93 = vector.load %arg17[%c0_54, %c0_55] : memref<1x32xf32, #tpu.memory_space<vmem>>, vector<1x32xf32>
    %cst_56 = arith.constant dense<0.000000e+00> : vector<16xf32>
    %94 = vector.multi_reduction <add>, %85, %cst_56 [0] : vector<32x16xf32> to vector<16xf32>
    %95 = vector.shape_cast %94 : vector<16xf32> to vector<1x16xf32>
    %cst_57 = arith.constant 3.200000e+01 : f32
    %96 = vector.broadcast %cst_57 : f32 to vector<1x16xf32>
    %97 = arith.divf %95, %96 : vector<1x16xf32>
    %98 = vector.broadcast %97 : vector<1x16xf32> to vector<32x16xf32>
    %99 = arith.subf %85, %98 : vector<32x16xf32>
    %100 = arith.mulf %99, %99 : vector<32x16xf32>
    %cst_58 = arith.constant dense<0.000000e+00> : vector<16xf32>
    %101 = vector.multi_reduction <add>, %100, %cst_58 [0] : vector<32x16xf32> to vector<16xf32>
    %102 = vector.shape_cast %101 : vector<16xf32> to vector<1x16xf32>
    %cst_59 = arith.constant 3.200000e+01 : f32
    %103 = vector.broadcast %cst_59 : f32 to vector<1x16xf32>
    %104 = arith.divf %102, %103 : vector<1x16xf32>
    %cst_60 = arith.constant 9.99999974E-6 : f32
    %105 = vector.broadcast %cst_60 : f32 to vector<1x16xf32>
    %106 = arith.addf %104, %105 : vector<1x16xf32>
    %107 = math.rsqrt %106 : vector<1x16xf32>
    %108 = arith.mulf %86, %107 : vector<1x16xf32>
    %109 = arith.mulf %97, %108 : vector<1x16xf32>
    %110 = arith.subf %87, %109 : vector<1x16xf32>
    %111 = vector.broadcast %108 : vector<1x16xf32> to vector<16x16xf32>
    %112 = arith.mulf %88, %111 : vector<16x16xf32>
    %cst_61 = arith.constant dense<0.000000e+00> : vector<1x16xf32>
    %113 = tpu.matmul %110, %88, %cst_61 {dimension_numbers = #tpu.dot_dimension_numbers<[1], [1], [0], [0], [0, 0, 1, 0], [], []>} : vector<1x16xf32>, vector<16x16xf32>, vector<1x16xf32> -> vector<1x16xf32>
    %114 = arith.addf %113, %89 : vector<1x16xf32>
    %115 = arith.truncf %85 : vector<32x16xf32> to vector<32x16xbf16>
    %116 = arith.truncf %112 : vector<16x16xf32> to vector<16x16xbf16>
    %cst_62 = arith.constant dense<0.000000e+00> : vector<32x16xf32>
    %117 = tpu.matmul %115, %116, %cst_62 {dimension_numbers = #tpu.dot_dimension_numbers<[1], [1], [0], [0], [0, 0, 1, 0], [], []>} : vector<32x16xbf16>, vector<16x16xbf16>, vector<32x16xf32> -> vector<32x16xf32>
    %118 = vector.broadcast %114 : vector<1x16xf32> to vector<32x16xf32>
    %119 = arith.addf %117, %118 : vector<32x16xf32>
    %cst_63 = arith.constant dense<0.000000e+00> : vector<16xf32>
    %120 = vector.multi_reduction <add>, %119, %cst_63 [0] : vector<32x16xf32> to vector<16xf32>
    %121 = vector.shape_cast %120 : vector<16xf32> to vector<1x16xf32>
    %cst_64 = arith.constant 3.200000e+01 : f32
    %122 = vector.broadcast %cst_64 : f32 to vector<1x16xf32>
    %123 = arith.divf %121, %122 : vector<1x16xf32>
    %124 = vector.broadcast %123 : vector<1x16xf32> to vector<32x16xf32>
    %125 = arith.subf %119, %124 : vector<32x16xf32>
    %126 = arith.mulf %125, %125 : vector<32x16xf32>
    %cst_65 = arith.constant dense<0.000000e+00> : vector<16xf32>
    %127 = vector.multi_reduction <add>, %126, %cst_65 [0] : vector<32x16xf32> to vector<16xf32>
    %128 = vector.shape_cast %127 : vector<16xf32> to vector<1x16xf32>
    %cst_66 = arith.constant 3.200000e+01 : f32
    %129 = vector.broadcast %cst_66 : f32 to vector<1x16xf32>
    %130 = arith.divf %128, %129 : vector<1x16xf32>
    %131 = vector.broadcast %123 : vector<1x16xf32> to vector<32x16xf32>
    %132 = arith.subf %119, %131 : vector<32x16xf32>
    %cst_67 = arith.constant 9.99999974E-6 : f32
    %133 = vector.broadcast %cst_67 : f32 to vector<1x16xf32>
    %134 = arith.addf %130, %133 : vector<1x16xf32>
    %135 = math.rsqrt %134 : vector<1x16xf32>
    %136 = vector.broadcast %135 : vector<1x16xf32> to vector<32x16xf32>
    %137 = arith.mulf %132, %136 : vector<32x16xf32>
    %138 = vector.broadcast %90 : vector<1x16xf32> to vector<32x16xf32>
    %139 = arith.mulf %137, %138 : vector<32x16xf32>
    %140 = vector.broadcast %91 : vector<1x16xf32> to vector<32x16xf32>
    %141 = arith.addf %139, %140 : vector<32x16xf32>
    %cst_68 = arith.constant 0.000000e+00 : f32
    %142 = vector.broadcast %cst_68 : f32 to vector<32x16xf32>
    %143 = arith.maximumf %141, %142 : vector<32x16xf32>
    %144 = vector.extract_strided_slice %143 {offsets = [0, 0], sizes = [8, 16], strides = [1, 1]} : vector<32x16xf32> to vector<8x16xf32>
    %cst_69 = arith.constant dense<0.000000e+00> : vector<16xf32>
    %145 = vector.multi_reduction <add>, %144, %cst_69 [0] : vector<8x16xf32> to vector<16xf32>
    %146 = vector.shape_cast %145 : vector<16xf32> to vector<1x16xf32>
    %cst_70 = arith.constant 8.000000e+00 : f32
    %147 = vector.broadcast %cst_70 : f32 to vector<1x16xf32>
    %148 = arith.divf %146, %147 : vector<1x16xf32>
    %149 = vector.extract_strided_slice %143 {offsets = [8, 0], sizes = [8, 16], strides = [1, 1]} : vector<32x16xf32> to vector<8x16xf32>
    %cst_71 = arith.constant dense<0.000000e+00> : vector<16xf32>
    %150 = vector.multi_reduction <add>, %149, %cst_71 [0] : vector<8x16xf32> to vector<16xf32>
    %151 = vector.shape_cast %150 : vector<16xf32> to vector<1x16xf32>
    %cst_72 = arith.constant 8.000000e+00 : f32
    %152 = vector.broadcast %cst_72 : f32 to vector<1x16xf32>
    %153 = arith.divf %151, %152 : vector<1x16xf32>
    %154 = vector.extract_strided_slice %143 {offsets = [16, 0], sizes = [8, 16], strides = [1, 1]} : vector<32x16xf32> to vector<8x16xf32>
    %cst_73 = arith.constant dense<0.000000e+00> : vector<16xf32>
    %155 = vector.multi_reduction <add>, %154, %cst_73 [0] : vector<8x16xf32> to vector<16xf32>
    %156 = vector.shape_cast %155 : vector<16xf32> to vector<1x16xf32>
    %cst_74 = arith.constant 8.000000e+00 : f32
    %157 = vector.broadcast %cst_74 : f32 to vector<1x16xf32>
    %158 = arith.divf %156, %157 : vector<1x16xf32>
    %159 = vector.extract_strided_slice %143 {offsets = [24, 0], sizes = [8, 16], strides = [1, 1]} : vector<32x16xf32> to vector<8x16xf32>
    %cst_75 = arith.constant dense<0.000000e+00> : vector<16xf32>
    %160 = vector.multi_reduction <add>, %159, %cst_75 [0] : vector<8x16xf32> to vector<16xf32>
    %161 = vector.shape_cast %160 : vector<16xf32> to vector<1x16xf32>
    %cst_76 = arith.constant 8.000000e+00 : f32
    %162 = vector.broadcast %cst_76 : f32 to vector<1x16xf32>
    %163 = arith.divf %161, %162 : vector<1x16xf32>
    %164 = tpu.concatenate %148, %153, %158, %163 in 0 : vector<1x16xf32>, vector<1x16xf32>, vector<1x16xf32>, vector<1x16xf32> -> vector<4x16xf32>
    %165 = arith.truncf %164 : vector<4x16xf32> to vector<4x16xbf16>
    %166 = arith.truncf %92 : vector<16x32xf32> to vector<16x32xbf16>
    %cst_77 = arith.constant dense<0.000000e+00> : vector<4x32xf32>
    %167 = tpu.matmul %165, %166, %cst_77 {dimension_numbers = #tpu.dot_dimension_numbers<[1], [0], [0], [1], [0, 0, 1, 1], [], []>} : vector<4x16xbf16>, vector<16x32xbf16>, vector<4x32xf32> -> vector<4x32xf32>
    %168 = vector.broadcast %93 : vector<1x32xf32> to vector<4x32xf32>
    %169 = arith.addf %167, %168 : vector<4x32xf32>
    %c0_78 = arith.constant 0 : index
    %c0_79 = arith.constant 0 : index
    %170 = vector.load %arg18[%c0_78, %c0_79] : memref<32x32xf32, #tpu.memory_space<vmem>>, vector<32x32xf32>
    %c0_80 = arith.constant 0 : index
    %c0_81 = arith.constant 0 : index
    %171 = vector.load %arg19[%c0_80, %c0_81] : memref<1x32xf32, #tpu.memory_space<vmem>>, vector<1x32xf32>
    %c0_82 = arith.constant 0 : index
    %c0_83 = arith.constant 0 : index
    %172 = vector.load %arg20[%c0_82, %c0_83] : memref<1x32xf32, #tpu.memory_space<vmem>>, vector<1x32xf32>
    %c0_84 = arith.constant 0 : index
    %c0_85 = arith.constant 0 : index
    %173 = vector.load %arg21[%c0_84, %c0_85] : memref<1x32xf32, #tpu.memory_space<vmem>>, vector<1x32xf32>
    %c0_86 = arith.constant 0 : index
    %c0_87 = arith.constant 0 : index
    %174 = vector.load %arg22[%c0_86, %c0_87] : memref<32x32xf32, #tpu.memory_space<vmem>>, vector<32x32xf32>
    %175 = arith.truncf %84 : vector<4x32xf32> to vector<4x32xbf16>
    %176 = arith.truncf %170 : vector<32x32xf32> to vector<32x32xbf16>
    %cst_88 = arith.constant dense<0.000000e+00> : vector<4x32xf32>
    %177 = tpu.matmul %175, %176, %cst_88 {dimension_numbers = #tpu.dot_dimension_numbers<[1], [0], [0], [1], [0, 0, 1, 1], [], []>} : vector<4x32xbf16>, vector<32x32xbf16>, vector<4x32xf32> -> vector<4x32xf32>
    %178 = vector.broadcast %171 : vector<1x32xf32> to vector<4x32xf32>
    %179 = arith.addf %177, %178 : vector<4x32xf32>
    %cst_89 = arith.constant dense<0.000000e+00> : vector<32xf32>
    %180 = vector.multi_reduction <add>, %179, %cst_89 [0] : vector<4x32xf32> to vector<32xf32>
    %181 = vector.shape_cast %180 : vector<32xf32> to vector<1x32xf32>
    %cst_90 = arith.constant 4.000000e+00 : f32
    %182 = vector.broadcast %cst_90 : f32 to vector<1x32xf32>
    %183 = arith.divf %181, %182 : vector<1x32xf32>
    %184 = vector.broadcast %183 : vector<1x32xf32> to vector<4x32xf32>
    %185 = arith.subf %179, %184 : vector<4x32xf32>
    %186 = arith.mulf %185, %185 : vector<4x32xf32>
    %cst_91 = arith.constant dense<0.000000e+00> : vector<32xf32>
    %187 = vector.multi_reduction <add>, %186, %cst_91 [0] : vector<4x32xf32> to vector<32xf32>
    %188 = vector.shape_cast %187 : vector<32xf32> to vector<1x32xf32>
    %cst_92 = arith.constant 4.000000e+00 : f32
    %189 = vector.broadcast %cst_92 : f32 to vector<1x32xf32>
    %190 = arith.divf %188, %189 : vector<1x32xf32>
    %191 = vector.broadcast %183 : vector<1x32xf32> to vector<4x32xf32>
    %192 = arith.subf %179, %191 : vector<4x32xf32>
    %cst_93 = arith.constant 9.99999974E-6 : f32
    %193 = vector.broadcast %cst_93 : f32 to vector<1x32xf32>
    %194 = arith.addf %190, %193 : vector<1x32xf32>
    %195 = math.rsqrt %194 : vector<1x32xf32>
    %196 = vector.broadcast %195 : vector<1x32xf32> to vector<4x32xf32>
    %197 = arith.mulf %192, %196 : vector<4x32xf32>
    %198 = vector.broadcast %172 : vector<1x32xf32> to vector<4x32xf32>
    %199 = arith.mulf %197, %198 : vector<4x32xf32>
    %200 = vector.broadcast %173 : vector<1x32xf32> to vector<4x32xf32>
    %201 = arith.addf %199, %200 : vector<4x32xf32>
    %cst_94 = arith.constant 0.000000e+00 : f32
    %202 = vector.broadcast %cst_94 : f32 to vector<4x32xf32>
    %203 = arith.maximumf %201, %202 : vector<4x32xf32>
    %204 = arith.truncf %203 : vector<4x32xf32> to vector<4x32xbf16>
    %205 = arith.truncf %174 : vector<32x32xf32> to vector<32x32xbf16>
    %cst_95 = arith.constant dense<0.000000e+00> : vector<4x32xf32>
    %206 = tpu.matmul %204, %205, %cst_95 {dimension_numbers = #tpu.dot_dimension_numbers<[1], [0], [0], [1], [0, 0, 1, 1], [], []>} : vector<4x32xbf16>, vector<32x32xbf16>, vector<4x32xf32> -> vector<4x32xf32>
    %c0_96 = arith.constant 0 : index
    %c0_97 = arith.constant 0 : index
    %207 = vector.load %arg18[%c0_96, %c0_97] : memref<32x32xf32, #tpu.memory_space<vmem>>, vector<32x32xf32>
    %c0_98 = arith.constant 0 : index
    %c0_99 = arith.constant 0 : index
    %208 = vector.load %arg19[%c0_98, %c0_99] : memref<1x32xf32, #tpu.memory_space<vmem>>, vector<1x32xf32>
    %c0_100 = arith.constant 0 : index
    %c0_101 = arith.constant 0 : index
    %209 = vector.load %arg20[%c0_100, %c0_101] : memref<1x32xf32, #tpu.memory_space<vmem>>, vector<1x32xf32>
    %c0_102 = arith.constant 0 : index
    %c0_103 = arith.constant 0 : index
    %210 = vector.load %arg21[%c0_102, %c0_103] : memref<1x32xf32, #tpu.memory_space<vmem>>, vector<1x32xf32>
    %c0_104 = arith.constant 0 : index
    %c0_105 = arith.constant 0 : index
    %211 = vector.load %arg22[%c0_104, %c0_105] : memref<32x32xf32, #tpu.memory_space<vmem>>, vector<32x32xf32>
    %212 = arith.truncf %169 : vector<4x32xf32> to vector<4x32xbf16>
    %213 = arith.truncf %207 : vector<32x32xf32> to vector<32x32xbf16>
    %cst_106 = arith.constant dense<0.000000e+00> : vector<4x32xf32>
    %214 = tpu.matmul %212, %213, %cst_106 {dimension_numbers = #tpu.dot_dimension_numbers<[1], [0], [0], [1], [0, 0, 1, 1], [], []>} : vector<4x32xbf16>, vector<32x32xbf16>, vector<4x32xf32> -> vector<4x32xf32>
    %215 = vector.broadcast %208 : vector<1x32xf32> to vector<4x32xf32>
    %216 = arith.addf %214, %215 : vector<4x32xf32>
    %cst_107 = arith.constant dense<0.000000e+00> : vector<32xf32>
    %217 = vector.multi_reduction <add>, %216, %cst_107 [0] : vector<4x32xf32> to vector<32xf32>
    %218 = vector.shape_cast %217 : vector<32xf32> to vector<1x32xf32>
    %cst_108 = arith.constant 4.000000e+00 : f32
    %219 = vector.broadcast %cst_108 : f32 to vector<1x32xf32>
    %220 = arith.divf %218, %219 : vector<1x32xf32>
    %221 = vector.broadcast %220 : vector<1x32xf32> to vector<4x32xf32>
    %222 = arith.subf %216, %221 : vector<4x32xf32>
    %223 = arith.mulf %222, %222 : vector<4x32xf32>
    %cst_109 = arith.constant dense<0.000000e+00> : vector<32xf32>
    %224 = vector.multi_reduction <add>, %223, %cst_109 [0] : vector<4x32xf32> to vector<32xf32>
    %225 = vector.shape_cast %224 : vector<32xf32> to vector<1x32xf32>
    %cst_110 = arith.constant 4.000000e+00 : f32
    %226 = vector.broadcast %cst_110 : f32 to vector<1x32xf32>
    %227 = arith.divf %225, %226 : vector<1x32xf32>
    %228 = vector.broadcast %220 : vector<1x32xf32> to vector<4x32xf32>
    %229 = arith.subf %216, %228 : vector<4x32xf32>
    %cst_111 = arith.constant 9.99999974E-6 : f32
    %230 = vector.broadcast %cst_111 : f32 to vector<1x32xf32>
    %231 = arith.addf %227, %230 : vector<1x32xf32>
    %232 = math.rsqrt %231 : vector<1x32xf32>
    %233 = vector.broadcast %232 : vector<1x32xf32> to vector<4x32xf32>
    %234 = arith.mulf %229, %233 : vector<4x32xf32>
    %235 = vector.broadcast %209 : vector<1x32xf32> to vector<4x32xf32>
    %236 = arith.mulf %234, %235 : vector<4x32xf32>
    %237 = vector.broadcast %210 : vector<1x32xf32> to vector<4x32xf32>
    %238 = arith.addf %236, %237 : vector<4x32xf32>
    %cst_112 = arith.constant 0.000000e+00 : f32
    %239 = vector.broadcast %cst_112 : f32 to vector<4x32xf32>
    %240 = arith.maximumf %238, %239 : vector<4x32xf32>
    %241 = arith.truncf %240 : vector<4x32xf32> to vector<4x32xbf16>
    %242 = arith.truncf %211 : vector<32x32xf32> to vector<32x32xbf16>
    %cst_113 = arith.constant dense<0.000000e+00> : vector<4x32xf32>
    %243 = tpu.matmul %241, %242, %cst_113 {dimension_numbers = #tpu.dot_dimension_numbers<[1], [0], [0], [1], [0, 0, 1, 1], [], []>} : vector<4x32xbf16>, vector<32x32xbf16>, vector<4x32xf32> -> vector<4x32xf32>
    %244 = arith.subf %206, %243 : vector<4x32xf32>
    %245 = arith.mulf %244, %244 : vector<4x32xf32>
    %246 = vector.shape_cast %245 : vector<4x32xf32> to vector<1x4x32xf32>
    %cst_114 = arith.constant dense<0.000000e+00> : vector<1xf32>
    %247 = vector.multi_reduction <add>, %246, %cst_114 [1, 2] : vector<1x4x32xf32> to vector<1xf32>
    %248 = vector.shape_cast %247 : vector<1xf32> to vector<1x1x1xf32>
    %249 = vector.extract %248[0, 0, 0] : f32 from vector<1x1x1xf32>
    %cst_115 = arith.constant 1.280000e+02 : f32
    %250 = arith.divf %249, %cst_115 : f32
    %cst_116 = arith.constant dense<0.000000e+00> : vector<32xf32>
    %251 = vector.multi_reduction <add>, %206, %cst_116 [0] : vector<4x32xf32> to vector<32xf32>
    %252 = vector.shape_cast %251 : vector<32xf32> to vector<1x32xf32>
    %cst_117 = arith.constant 4.000000e+00 : f32
    %253 = vector.broadcast %cst_117 : f32 to vector<1x32xf32>
    %254 = arith.divf %252, %253 : vector<1x32xf32>
    %255 = vector.broadcast %254 : vector<1x32xf32> to vector<4x32xf32>
    %256 = arith.subf %206, %255 : vector<4x32xf32>
    %cst_118 = arith.constant dense<0.000000e+00> : vector<32xf32>
    %257 = vector.multi_reduction <add>, %243, %cst_118 [0] : vector<4x32xf32> to vector<32xf32>
    %258 = vector.shape_cast %257 : vector<32xf32> to vector<1x32xf32>
    %cst_119 = arith.constant 4.000000e+00 : f32
    %259 = vector.broadcast %cst_119 : f32 to vector<1x32xf32>
    %260 = arith.divf %258, %259 : vector<1x32xf32>
    %261 = vector.broadcast %260 : vector<1x32xf32> to vector<4x32xf32>
    %262 = arith.subf %243, %261 : vector<4x32xf32>
    %263 = arith.mulf %256, %256 : vector<4x32xf32>
    %cst_120 = arith.constant dense<0.000000e+00> : vector<32xf32>
    %264 = vector.multi_reduction <add>, %263, %cst_120 [0] : vector<4x32xf32> to vector<32xf32>
    %265 = vector.shape_cast %264 : vector<32xf32> to vector<1x32xf32>
    %cst_121 = arith.constant 3.000000e+00 : f32
    %266 = vector.broadcast %cst_121 : f32 to vector<1x32xf32>
    %267 = arith.divf %265, %266 : vector<1x32xf32>
    %268 = arith.mulf %262, %262 : vector<4x32xf32>
    %cst_122 = arith.constant dense<0.000000e+00> : vector<32xf32>
    %269 = vector.multi_reduction <add>, %268, %cst_122 [0] : vector<4x32xf32> to vector<32xf32>
    %270 = vector.shape_cast %269 : vector<32xf32> to vector<1x32xf32>
    %cst_123 = arith.constant 3.000000e+00 : f32
    %271 = vector.broadcast %cst_123 : f32 to vector<1x32xf32>
    %272 = arith.divf %270, %271 : vector<1x32xf32>
    %cst_124 = arith.constant 9.99999974E-5 : f32
    %273 = vector.broadcast %cst_124 : f32 to vector<1x32xf32>
    %274 = arith.addf %267, %273 : vector<1x32xf32>
    %275 = math.sqrt %274 : vector<1x32xf32>
    %cst_125 = arith.constant 1.000000e+00 : f32
    %276 = vector.broadcast %cst_125 : f32 to vector<1x32xf32>
    %277 = arith.subf %276, %275 : vector<1x32xf32>
    %cst_126 = arith.constant 0.000000e+00 : f32
    %278 = vector.broadcast %cst_126 : f32 to vector<1x32xf32>
    %279 = arith.maximumf %277, %278 : vector<1x32xf32>
    %280 = vector.shape_cast %279 : vector<1x32xf32> to vector<1x1x32xf32>
    %cst_127 = arith.constant dense<0.000000e+00> : vector<1xf32>
    %281 = vector.multi_reduction <add>, %280, %cst_127 [1, 2] : vector<1x1x32xf32> to vector<1xf32>
    %282 = vector.shape_cast %281 : vector<1xf32> to vector<1x1x1xf32>
    %283 = vector.extract %282[0, 0, 0] : f32 from vector<1x1x1xf32>
    %cst_128 = arith.constant 3.200000e+01 : f32
    %284 = arith.divf %283, %cst_128 : f32
    %cst_129 = arith.constant 2.000000e+00 : f32
    %285 = arith.divf %284, %cst_129 : f32
    %cst_130 = arith.constant 9.99999974E-5 : f32
    %286 = vector.broadcast %cst_130 : f32 to vector<1x32xf32>
    %287 = arith.addf %272, %286 : vector<1x32xf32>
    %288 = math.sqrt %287 : vector<1x32xf32>
    %cst_131 = arith.constant 1.000000e+00 : f32
    %289 = vector.broadcast %cst_131 : f32 to vector<1x32xf32>
    %290 = arith.subf %289, %288 : vector<1x32xf32>
    %cst_132 = arith.constant 0.000000e+00 : f32
    %291 = vector.broadcast %cst_132 : f32 to vector<1x32xf32>
    %292 = arith.maximumf %290, %291 : vector<1x32xf32>
    %293 = vector.shape_cast %292 : vector<1x32xf32> to vector<1x1x32xf32>
    %cst_133 = arith.constant dense<0.000000e+00> : vector<1xf32>
    %294 = vector.multi_reduction <add>, %293, %cst_133 [1, 2] : vector<1x1x32xf32> to vector<1xf32>
    %295 = vector.shape_cast %294 : vector<1xf32> to vector<1x1x1xf32>
    %296 = vector.extract %295[0, 0, 0] : f32 from vector<1x1x1xf32>
    %cst_134 = arith.constant 3.200000e+01 : f32
    %297 = arith.divf %296, %cst_134 : f32
    %cst_135 = arith.constant 2.000000e+00 : f32
    %298 = arith.divf %297, %cst_135 : f32
    %299 = arith.addf %285, %298 : f32
    %300 = arith.truncf %256 : vector<4x32xf32> to vector<4x32xbf16>
    %301 = arith.truncf %262 : vector<4x32xf32> to vector<4x32xbf16>
    %cst_136 = arith.constant dense<0.000000e+00> : vector<32x32xf32>
    %302 = tpu.matmul %300, %300, %cst_136 {dimension_numbers = #tpu.dot_dimension_numbers<[0], [0], [1], [1], [0, 1, 1, 1], [], []>} : vector<4x32xbf16>, vector<4x32xbf16>, vector<32x32xf32> -> vector<32x32xf32>
    %cst_137 = arith.constant 3.000000e+00 : f32
    %303 = vector.broadcast %cst_137 : f32 to vector<32x32xf32>
    %304 = arith.divf %302, %303 : vector<32x32xf32>
    %cst_138 = arith.constant dense<0.000000e+00> : vector<32x32xf32>
    %305 = tpu.matmul %301, %301, %cst_138 {dimension_numbers = #tpu.dot_dimension_numbers<[0], [0], [1], [1], [0, 1, 1, 1], [], []>} : vector<4x32xbf16>, vector<4x32xbf16>, vector<32x32xf32> -> vector<32x32xf32>
    %cst_139 = arith.constant 3.000000e+00 : f32
    %306 = vector.broadcast %cst_139 : f32 to vector<32x32xf32>
    %307 = arith.divf %305, %306 : vector<32x32xf32>
    %308 = arith.extf %300 : vector<4x32xbf16> to vector<4x32xf32>
    %309 = arith.mulf %308, %308 : vector<4x32xf32>
    %cst_140 = arith.constant dense<0.000000e+00> : vector<32xf32>
    %310 = vector.multi_reduction <add>, %309, %cst_140 [0] : vector<4x32xf32> to vector<32xf32>
    %311 = vector.shape_cast %310 : vector<32xf32> to vector<1x32xf32>
    %cst_141 = arith.constant 3.000000e+00 : f32
    %312 = vector.broadcast %cst_141 : f32 to vector<1x32xf32>
    %313 = arith.divf %311, %312 : vector<1x32xf32>
    %314 = arith.extf %301 : vector<4x32xbf16> to vector<4x32xf32>
    %315 = arith.mulf %314, %314 : vector<4x32xf32>
    %cst_142 = arith.constant dense<0.000000e+00> : vector<32xf32>
    %316 = vector.multi_reduction <add>, %315, %cst_142 [0] : vector<4x32xf32> to vector<32xf32>
    %317 = vector.shape_cast %316 : vector<32xf32> to vector<1x32xf32>
    %cst_143 = arith.constant 3.000000e+00 : f32
    %318 = vector.broadcast %cst_143 : f32 to vector<1x32xf32>
    %319 = arith.divf %317, %318 : vector<1x32xf32>
    %320 = arith.mulf %304, %304 : vector<32x32xf32>
    %321 = vector.shape_cast %320 : vector<32x32xf32> to vector<1x32x32xf32>
    %cst_144 = arith.constant dense<0.000000e+00> : vector<1xf32>
    %322 = vector.multi_reduction <add>, %321, %cst_144 [1, 2] : vector<1x32x32xf32> to vector<1xf32>
    %323 = vector.shape_cast %322 : vector<1xf32> to vector<1x1x1xf32>
    %324 = vector.extract %323[0, 0, 0] : f32 from vector<1x1x1xf32>
    %325 = arith.mulf %313, %313 : vector<1x32xf32>
    %326 = vector.shape_cast %325 : vector<1x32xf32> to vector<1x1x32xf32>
    %cst_145 = arith.constant dense<0.000000e+00> : vector<1xf32>
    %327 = vector.multi_reduction <add>, %326, %cst_145 [1, 2] : vector<1x1x32xf32> to vector<1xf32>
    %328 = vector.shape_cast %327 : vector<1xf32> to vector<1x1x1xf32>
    %329 = vector.extract %328[0, 0, 0] : f32 from vector<1x1x1xf32>
    %330 = arith.subf %324, %329 : f32
    %331 = arith.mulf %307, %307 : vector<32x32xf32>
    %332 = vector.shape_cast %331 : vector<32x32xf32> to vector<1x32x32xf32>
    %cst_146 = arith.constant dense<0.000000e+00> : vector<1xf32>
    %333 = vector.multi_reduction <add>, %332, %cst_146 [1, 2] : vector<1x32x32xf32> to vector<1xf32>
    %334 = vector.shape_cast %333 : vector<1xf32> to vector<1x1x1xf32>
    %335 = vector.extract %334[0, 0, 0] : f32 from vector<1x1x1xf32>
    %336 = arith.mulf %319, %319 : vector<1x32xf32>
    %337 = vector.shape_cast %336 : vector<1x32xf32> to vector<1x1x32xf32>
    %cst_147 = arith.constant dense<0.000000e+00> : vector<1xf32>
    %338 = vector.multi_reduction <add>, %337, %cst_147 [1, 2] : vector<1x1x32xf32> to vector<1xf32>
    %339 = vector.shape_cast %338 : vector<1xf32> to vector<1x1x1xf32>
    %340 = vector.extract %339[0, 0, 0] : f32 from vector<1x1x1xf32>
    %341 = arith.subf %335, %340 : f32
    %cst_148 = arith.constant 3.200000e+01 : f32
    %342 = arith.divf %330, %cst_148 : f32
    %cst_149 = arith.constant 3.200000e+01 : f32
    %343 = arith.divf %341, %cst_149 : f32
    %344 = arith.addf %342, %343 : f32
    %cst_150 = arith.constant 2.500000e+01 : f32
    %345 = arith.mulf %cst_150, %250 : f32
    %cst_151 = arith.constant 2.500000e+01 : f32
    %346 = arith.mulf %cst_151, %299 : f32
    %347 = arith.addf %345, %346 : f32
    %cst_152 = arith.constant 1.000000e+00 : f32
    %348 = arith.mulf %cst_152, %344 : f32
    %349 = arith.addf %347, %348 : f32
    %c0_153 = arith.constant 0 : index
    %c0_154 = arith.constant 0 : index
    %350 = memref.load %arg23[%c0_153, %c0_154] : memref<1x1xf32, #tpu.memory_space<smem>>
    memref.store %349, %arg23[%c0_153, %c0_154] : memref<1x1xf32, #tpu.memory_space<smem>>
    return
  }
}

</mosaic_0001>

<llo_original>
// kernel: tpu_custom_call.1
$region0: #{tpu_custom_call.1}
  #allocation0 [shape = 'u32[]', space=smem, size = 0x4, offset = 0x4, fixed_abs, tag = 'smem constant byte address 0x4 - core index']
  #allocation1 [shape = 'u32[144,128]{1,0:T(1,128)}', space=vmem, size = 0x12000, scoped, tag = 'internal scratch']
  %s0 = inlined_call_operand.vmem [shape: f32[32,8], index: 0, kind: input, shape index: {}]
  %s1 = inlined_call_operand.vmem [shape: f32[32,16], index: 1, kind: input, shape index: {}]
  %s2 = inlined_call_operand.vmem [shape: f32[1,8], index: 2, kind: input, shape index: {}]
  %s3 = inlined_call_operand.vmem [shape: f32[1,8], index: 3, kind: input, shape index: {}]
  %s4 = inlined_call_operand.vmem [shape: f32[16,8], index: 4, kind: input, shape index: {}]
  %s5 = inlined_call_operand.hbm [shape: f32[1,16], index: 5, kind: input, shape index: {}]
  %s6 = inlined_call_operand.vmem [shape: f32[1,16], index: 6, kind: input, shape index: {}]
  %s7 = inlined_call_operand.vmem [shape: f32[1,16], index: 7, kind: input, shape index: {}]
  %s8 = inlined_call_operand.vmem [shape: f32[16,32], index: 8, kind: input, shape index: {}]
  %s9 = inlined_call_operand.vmem [shape: f32[1,32], index: 9, kind: input, shape index: {}]
  %s10 = inlined_call_operand.vmem [shape: f32[1,16], index: 10, kind: input, shape index: {}]
  %s11 = inlined_call_operand.vmem [shape: f32[1,16], index: 11, kind: input, shape index: {}]
  %s12 = inlined_call_operand.vmem [shape: f32[16,16], index: 12, kind: input, shape index: {}]
  %s13 = inlined_call_operand.vmem [shape: f32[1,16], index: 13, kind: input, shape index: {}]
  %s14 = inlined_call_operand.vmem [shape: f32[1,16], index: 14, kind: input, shape index: {}]
  %s15 = inlined_call_operand.vmem [shape: f32[1,16], index: 15, kind: input, shape index: {}]
  %s16 = inlined_call_operand.vmem [shape: f32[16,32], index: 16, kind: input, shape index: {}]
  %s17 = inlined_call_operand.vmem [shape: f32[1,32], index: 17, kind: input, shape index: {}]
  %s18 = inlined_call_operand.vmem [shape: f32[32,32], index: 18, kind: input, shape index: {}]
  %s19 = inlined_call_operand.vmem [shape: f32[1,32], index: 19, kind: input, shape index: {}]
  %s20 = inlined_call_operand.vmem [shape: f32[1,32], index: 20, kind: input, shape index: {}]
  %s21 = inlined_call_operand.vmem [shape: f32[1,32], index: 21, kind: input, shape index: {}]
  %s22 = inlined_call_operand.vmem [shape: f32[32,32], index: 22, kind: input, shape index: {}]
  %s23 = inlined_call_operand.hbm [shape: f32[1,1], index: 23, kind: output, shape index: {}]
  %s24 = sld [smem:[#allocation0]]
  $region106: #{tpu_custom_call.1} parent=0
    _
  %s26 = ssub.s32 1, %s24
  %s27 = scalar_select 0, %s26, %s24
  $region1: #{tpu_custom_call.1} parent=0
    #allocation2 [shape = 'u8[512]{0}', space=vmem, size = 0x400, scoped, tag = 'input window, operand 5, single buffered']
    #allocation3 [shape = 's32[1]{0}', space=sflag, size = 0x4, scoped, tag = 'scoped memory for tpu_custom_call.1']
    #allocation4 [shape = 's32[1]{0}', space=sflag, size = 0x4, scoped, tag = 'scoped memory for tpu_custom_call.1']
    #allocation5 [shape = 'u8[512]{0}', space=smem, size = 0x200, scoped, tag = 'output window, operand 0, single buffered']
    %28 = vsyncpa [#allocation3], 0
    %29 = vsyncpa [#allocation4], 0
    // Predicated region
    $region2: #{tpu_custom_call.1} parent=1 // pred_check
      _
    $region3: #{tpu_custom_call.1} parent=1 // pred_check_branch
      %31 = sbr.rel (0) target = $region5
    $region4: #{tpu_custom_call.1} parent=1 // pred_region
      _
    $region5: #{tpu_custom_call.1} parent=1 // pred_fallthru
      _
    // Predicated region
    $region6: #{tpu_custom_call.1} parent=1 // pred_check
      _
    $region7: #{tpu_custom_call.1} parent=1 // pred_check_branch
      %33 = sbr.rel (0) target = $region9
    $region8: #{tpu_custom_call.1} parent=1 // pred_region
      _
    $region9: #{tpu_custom_call.1} parent=1 // pred_fallthru
      _
    // Predicated region
    $region10: #{tpu_custom_call.1} parent=1 // pred_check
      _
    $region11: #{tpu_custom_call.1} parent=1 // pred_check_branch
      %35 = sbr.rel (0) target = $region13
    $region12: #{tpu_custom_call.1} parent=1 // pred_region
      _
    $region13: #{tpu_custom_call.1} parent=1 // pred_fallthru
      _
    // Predicated region
    $region14: #{tpu_custom_call.1} parent=1 // pred_check
      _
    $region15: #{tpu_custom_call.1} parent=1 // pred_check_branch
      %37 = sbr.rel (0) target = $region17
    $region16: #{tpu_custom_call.1} parent=1 // pred_region
      _
    $region17: #{tpu_custom_call.1} parent=1 // pred_fallthru
      _
    // Predicated region
    $region18: #{tpu_custom_call.1} parent=1 // pred_check
      _
    $region19: #{tpu_custom_call.1} parent=1 // pred_check_branch
      %39 = sbr.rel (0) target = $region21
    $region20: #{tpu_custom_call.1} parent=1 // pred_region
      _
    $region21: #{tpu_custom_call.1} parent=1 // pred_fallthru
      _
    // Predicated region
    $region22: #{tpu_custom_call.1} parent=1 // pred_check
      _
    $region23: #{tpu_custom_call.1} parent=1 // pred_check_branch
      %41 = sbr.rel (0) target = $region25
    $region24: #{tpu_custom_call.1} parent=1 // pred_region
      %s43 = ssub.s32 16, 16
      %44 = vsyncadd [#allocation3], %s43
      %s46 = sshll.u32 [#allocation2], 4
      %s47 = int_to_ptr.vmem [resolvable:$true] %s46
      %49 = dma.hbm_to_vmem [thread:$0]  %s5, 16, %s47, [#allocation3]
    $region25: #{tpu_custom_call.1} parent=1 // pred_fallthru
      _
    // Predicated region
    $region26: #{tpu_custom_call.1} parent=1 // pred_check
      _
    $region27: #{tpu_custom_call.1} parent=1 // pred_check_branch
      %51 = sbr.rel (0) target = $region29
    $region28: #{tpu_custom_call.1} parent=1 // pred_region
      _
    $region29: #{tpu_custom_call.1} parent=1 // pred_fallthru
      _
    // Predicated region
    $region30: #{tpu_custom_call.1} parent=1 // pred_check
      _
    $region31: #{tpu_custom_call.1} parent=1 // pred_check_branch
      %53 = sbr.rel (0) target = $region33
    $region32: #{tpu_custom_call.1} parent=1 // pred_region
      _
    $region33: #{tpu_custom_call.1} parent=1 // pred_fallthru
      _
    // Predicated region
    $region34: #{tpu_custom_call.1} parent=1 // pred_check
      _
    $region35: #{tpu_custom_call.1} parent=1 // pred_check_branch
      %55 = sbr.rel (0) target = $region37
    $region36: #{tpu_custom_call.1} parent=1 // pred_region
      _
    $region37: #{tpu_custom_call.1} parent=1 // pred_fallthru
      _
    // Predicated region
    $region38: #{tpu_custom_call.1} parent=1 // pred_check
      _
    $region39: #{tpu_custom_call.1} parent=1 // pred_check_branch
      %57 = sbr.rel (0) target = $region41
    $region40: #{tpu_custom_call.1} parent=1 // pred_region
      _
    $region41: #{tpu_custom_call.1} parent=1 // pred_fallthru
      _
    // Predicated region
    $region42: #{tpu_custom_call.1} parent=1 // pred_check
      _
    $region43: #{tpu_custom_call.1} parent=1 // pred_check_branch
      %59 = sbr.rel (0) target = $region45
    $region44: #{tpu_custom_call.1} parent=1 // pred_region
      _
    $region45: #{tpu_custom_call.1} parent=1 // pred_fallthru
      _
    // Predicated region
    $region46: #{tpu_custom_call.1} parent=1 // pred_check
      _
    $region47: #{tpu_custom_call.1} parent=1 // pred_check_branch
      %61 = sbr.rel (0) target = $region49
    $region48: #{tpu_custom_call.1} parent=1 // pred_region
      _
    $region49: #{tpu_custom_call.1} parent=1 // pred_fallthru
      _
    // Predicated region
    $region50: #{tpu_custom_call.1} parent=1 // pred_check
      _
    $region51: #{tpu_custom_call.1} parent=1 // pred_check_branch
      %63 = sbr.rel (0) target = $region53
    $region52: #{tpu_custom_call.1} parent=1 // pred_region
      _
    $region53: #{tpu_custom_call.1} parent=1 // pred_fallthru
      _
    // Predicated region
    $region54: #{tpu_custom_call.1} parent=1 // pred_check
      _
    $region55: #{tpu_custom_call.1} parent=1 // pred_check_branch
      %65 = sbr.rel (0) target = $region57
    $region56: #{tpu_custom_call.1} parent=1 // pred_region
      _
    $region57: #{tpu_custom_call.1} parent=1 // pred_fallthru
      _
    // Predicated region
    $region58: #{tpu_custom_call.1} parent=1 // pred_check
      _
    $region59: #{tpu_custom_call.1} parent=1 // pred_check_branch
      %67 = sbr.rel (0) target = $region61
    $region60: #{tpu_custom_call.1} parent=1 // pred_region
      _
    $region61: #{tpu_custom_call.1} parent=1 // pred_fallthru
      _
    // Predicated region
    $region62: #{tpu_custom_call.1} parent=1 // pred_check
      _
    $region63: #{tpu_custom_call.1} parent=1 // pred_check_branch
      %69 = sbr.rel (0) target = $region65
    $region64: #{tpu_custom_call.1} parent=1 // pred_region
      _
    $region65: #{tpu_custom_call.1} parent=1 // pred_fallthru
      _
    // Predicated region
    $region66: #{tpu_custom_call.1} parent=1 // pred_check
      _
    $region67: #{tpu_custom_call.1} parent=1 // pred_check_branch
      %71 = sbr.rel (0) target = $region69
    $region68: #{tpu_custom_call.1} parent=1 // pred_region
      _
    $region69: #{tpu_custom_call.1} parent=1 // pred_fallthru
      _
    // Predicated region
    $region70: #{tpu_custom_call.1} parent=1 // pred_check
      _
    $region71: #{tpu_custom_call.1} parent=1 // pred_check_branch
      %73 = sbr.rel (0) target = $region73
    $region72: #{tpu_custom_call.1} parent=1 // pred_region
      _
    $region73: #{tpu_custom_call.1} parent=1 // pred_fallthru
      _
    // Predicated region
    $region74: #{tpu_custom_call.1} parent=1 // pred_check
      _
    $region75: #{tpu_custom_call.1} parent=1 // pred_check_branch
      %75 = sbr.rel (0) target = $region77
    $region76: #{tpu_custom_call.1} parent=1 // pred_region
      _
    $region77: #{tpu_custom_call.1} parent=1 // pred_fallthru
      _
    // Predicated region
    $region78: #{tpu_custom_call.1} parent=1 // pred_check
      _
    $region79: #{tpu_custom_call.1} parent=1 // pred_check_branch
      %77 = sbr.rel (0) target = $region81
    $region80: #{tpu_custom_call.1} parent=1 // pred_region
      _
    $region81: #{tpu_custom_call.1} parent=1 // pred_fallthru
      _
    // Predicated region
    $region82: #{tpu_custom_call.1} parent=1 // pred_check
      _
    $region83: #{tpu_custom_call.1} parent=1 // pred_check_branch
      %79 = sbr.rel (0) target = $region85
    $region84: #{tpu_custom_call.1} parent=1 // pred_region
      _
    $region85: #{tpu_custom_call.1} parent=1 // pred_fallthru
      _
    // Predicated region
    $region86: #{tpu_custom_call.1} parent=1 // pred_check
      _
    $region87: #{tpu_custom_call.1} parent=1 // pred_check_branch
      %81 = sbr.rel (0) target = $region89
    $region88: #{tpu_custom_call.1} parent=1 // pred_region
      _
    $region89: #{tpu_custom_call.1} parent=1 // pred_fallthru
      _
    // Predicated region
    $region90: #{tpu_custom_call.1} parent=1 // pred_check
      _
    $region91: #{tpu_custom_call.1} parent=1 // pred_check_branch
      %83 = sbr.rel (0) target = $region93
    $region92: #{tpu_custom_call.1} parent=1 // pred_region
      _
    $region93: #{tpu_custom_call.1} parent=1 // pred_fallthru
      _
    // Predicated region
    $region94: #{tpu_custom_call.1} parent=1 // pred_check
      _
    $region95: #{tpu_custom_call.1} parent=1 // pred_check_branch
      %85 = sbr.rel (0) target = $region97
    $region96: #{tpu_custom_call.1} parent=1 // pred_region
      %86 = dma.done [#allocation3], 16
    $region97: #{tpu_custom_call.1} parent=1 // pred_fallthru
      _
    %v88 = vld [vmem:[%s0] sm:$0xff]
    %v89 = vld [vmem:[%s0 + $0x8] sm:$0xff]
    %v90 = vld [vmem:[%s0 + $0x10] sm:$0xff]
    %v91 = vld [vmem:[%s0 + $0x18] sm:$0xff]
    %v92 = vld [vmem:[%s2] sm:$0x1]
    %v93 = vld [vmem:[%s3] sm:$0x1]
    %v94 = vld [vmem:[%s4] sm:$0xff]
    %v95 = vld [vmem:[%s4 + $0x8] sm:$0xff]
    %v96 = vld [vmem:[#allocation2] sm:$0x1]
    %v97 = vld [vmem:[%s6] sm:$0x1]
    %v98 = vld [vmem:[%s7] sm:$0x1]
    %v99 = vld [vmem:[%s8] sm:$0xff]
    %v100 = vld [vmem:[%s8 + $0x8] sm:$0xff]
    %v101 = vld [vmem:[%s9] sm:$0x1]
    %vm102 = vcmask 64512
    %v103 = vsel %vm102, %v88, 0.0
    %v104 = vsel %vm102, %v89, 0.0
    %v105 = vadd.f32 %v103, %v104
    %v106 = vsel %vm102, %v90, 0.0
    %v107 = vadd.f32 %v105, %v106
    %v108 = vsel %vm102, %v91, 0.0
    %v109 = vadd.f32 %v107, %v108
    %v110 = vrot.slane %v109, 4
    %v111 = vadd.f32 %v109, %v110
    %v112 = vrot.slane %v111, 2
    %v113 = vadd.f32 %v111, %v112
    %v114 = vrot.slane %v113, 1
    %v115 = vadd.f32 %v113, %v114
    %v116 = vrcp.pop 32.0
    %v117 = vmul.f32 %v115, %v116
    %v118 = vsub.f32 %v88, %v117
    %v119 = vsub.f32 %v89, %v117
    %v120 = vsub.f32 %v90, %v117
    %v121 = vsub.f32 %v91, %v117
    %v122 = vmul.f32 %v118, %v118
    %v123 = vmul.f32 %v119, %v119
    %v124 = vmul.f32 %v120, %v120
    %v125 = vmul.f32 %v121, %v121
    %v126 = vsel %vm102, %v122, 0.0
    %v127 = vsel %vm102, %v123, 0.0
    %v128 = vadd.f32 %v126, %v127
    %v129 = vsel %vm102, %v124, 0.0
    %v130 = vadd.f32 %v128, %v129
    %v131 = vsel %vm102, %v125, 0.0
    %v132 = vadd.f32 %v130, %v131
    %v133 = vrot.slane %v132, 4
    %v134 = vadd.f32 %v132, %v133
    %v135 = vrot.slane %v134, 2
    %v136 = vadd.f32 %v134, %v135
    %v137 = vrot.slane %v136, 1
    %v138 = vadd.f32 %v136, %v137
    %v139 = vmul.f32 %v138, %v116
    %v140 = vadd.f32 %v139, 1e-05
    %v141 = vrsqrt.pop %v140
    %v142 = vmul.f32 %v92, %v141
    %v143 = vmul.f32 %v117, %v142
    %v144 = vsub.f32 %v93, %v143
    %v146 = vlaneseq
    %v147 = vshrl.u32 %v146, 7
    %v148 = vsub.s32 0, %v147
    %v149 = vrot.slane %v142, %v148
    %v151 = vmul.f32 %v94, %v149
    %v152 = vmul.f32 %v95, %v149
    %v154 = vsel %vm102, %v144, 0
    %v157 = vsel %vm102, %v94, 0
    %v160 = vsel %vm102, %v95, 0
    %162 = vmatprep.subr.mxu0 0.0
    %163 = vmatpush1.xpose.msra.mxu0 %v157
    %164 = vmatprep.subr.mxu0 0.0
    %165 = vmatpush1.xpose.msra.mxu0 %v160
    %166 = vmatprep.subr.mxu0 0.0
    %167 = vmatpush1.xpose.msra.mxu0 0.0
    %168 = vmatprep.subr.mxu0 0.0
    %169 = vmatpush1.xpose.msra.mxu0 0.0
    %170 = vmatprep.subr.mxu0 0.0
    %171 = vmatpush1.xpose.msra.mxu0 0.0
    %172 = vmatprep.subr.mxu0 0.0
    %173 = vmatpush1.xpose.msra.mxu0 0.0
    %174 = vmatprep.subr.mxu0 0.0
    %175 = vmatpush1.xpose.msra.mxu0 0.0
    %176 = vmatprep.subr.mxu0 0.0
    %177 = vmatpush1.xpose.msra.mxu0 0.0
    %178 = vmatprep.subr.mxu0 0.0
    %179 = vmatpush1.xpose.msra.mxu0 0.0
    %180 = vmatprep.subr.mxu0 0.0
    %181 = vmatpush1.xpose.msra.mxu0 0.0
    %182 = vmatprep.subr.mxu0 0.0
    %183 = vmatpush1.xpose.msra.mxu0 0.0
    %184 = vmatprep.subr.mxu0 0.0
    %185 = vmatpush1.xpose.msra.mxu0 0.0
    %186 = vmatprep.subr.mxu0 0.0
    %187 = vmatpush1.xpose.msra.mxu0 0.0
    %188 = vmatprep.subr.mxu0 0.0
    %189 = vmatpush1.xpose.msra.mxu0 0.0
    %190 = vmatprep.subr.mxu0 0.0
    %191 = vmatpush1.xpose.msra.mxu0 0.0
    %192 = vmatprep.subr.mxu0 0.0
    %193 = vmatpush1.xpose.msra.mxu0 0.0
    %194 = vmatprep.subr.mxu0 0.0
    %195 = vmatpush1.xpose.msra.mxu0 0.0
    %196 = vmatprep.subr.mxu0 0.0
    %197 = vmatpush1.xpose.msra.mxu0 0.0
    %198 = vmatprep.subr.mxu0 0.0
    %199 = vmatpush1.xpose.msra.mxu0 0.0
    %200 = vmatprep.subr.mxu0 0.0
    %201 = vmatpush1.xpose.msra.mxu0 0.0
    %202 = vmatprep.subr.mxu0 0.0
    %203 = vmatpush1.xpose.msra.mxu0 0.0
    %204 = vmatprep.subr.mxu0 0.0
    %205 = vmatpush1.xpose.msra.mxu0 0.0
    %206 = vmatprep.subr.mxu0 0.0
    %207 = vmatpush1.xpose.msra.mxu0 0.0
    %208 = vmatprep.subr.mxu0 0.0
    %209 = vmatpush1.xpose.msra.mxu0 0.0
    %210 = vmatprep.subr.mxu0 0.0
    %211 = vmatpush1.xpose.msra.mxu0 0.0
    %212 = vmatprep.subr.mxu0 0.0
    %213 = vmatpush1.xpose.msra.mxu0 0.0
    %214 = vmatprep.subr.mxu0 0.0
    %215 = vmatpush1.xpose.msra.mxu0 0.0
    %216 = vmatprep.subr.mxu0 0.0
    %217 = vmatpush1.xpose.msra.mxu0 0.0
    %218 = vmatprep.subr.mxu0 0.0
    %219 = vmatpush1.xpose.msra.mxu0 0.0
    %220 = vmatprep.subr.mxu0 0.0
    %221 = vmatpush1.xpose.msra.mxu0 0.0
    %222 = vmatprep.subr.mxu0 0.0
    %223 = vmatpush1.xpose.msra.mxu0 0.0
    %224 = vmatprep.subr.mxu0 0.0
    %225 = vmatpush1.xpose.msra.mxu0 0.0
    %226 = vmatprep.mubr.f32.mxu0 0.0
    %227 = vmatmul.mubr.f32.gmra.mrb[0].mxu0 %v154
    %v228 = vpop.f32.mrb[0].mxu0
    %v229 = vadd.f32 %v96, %v228
    %v230 = vpop.f32.mrb[0].mxu0
    %231 = vdwg.mxu0
    %v232 = vpack.c.bf16 %v89, %v88
    %v233 = vpack.c.bf16 %v91, %v90
    %v234 = vpack.c.bf16 %v152, %v151
    %v235 = vlaneseq
    %v236 = vshrl.u32 %v235, 7
    %v237 = vsub.s32 0, %v236
    %v238 = vrot.slane %v229, %v237
    %v240 = vsel %vm102, %v232, 0
    %v243 = vsel %vm102, %v233, 0
    %v246 = vsel %vm102, %v234, 0
    %248 = vmatprep.subr.bf16.mxu0 0
    %249 = vmatpush1.bf16.xpose.msra.mxu0 %v246
    %250 = vmatprep.subr.bf16.mxu0 0
    %251 = vmatpush1.bf16.xpose.msra.mxu0 0
    %252 = vmatprep.subr.bf16.mxu0 0
    %253 = vmatpush1.bf16.xpose.msra.mxu0 0
    %254 = vmatprep.subr.bf16.mxu0 0
    %255 = vmatpush1.bf16.xpose.msra.mxu0 0
    %256 = vmatprep.subr.bf16.mxu0 0
    %257 = vmatpush1.bf16.xpose.msra.mxu0 0
    %258 = vmatprep.subr.bf16.mxu0 0
    %259 = vmatpush1.bf16.xpose.msra.mxu0 0
    %260 = vmatprep.subr.bf16.mxu0 0
    %261 = vmatpush1.bf16.xpose.msra.mxu0 0
    %262 = vmatprep.subr.bf16.mxu0 0
    %263 = vmatpush1.bf16.xpose.msra.mxu0 0
    %264 = vmatprep.subr.bf16.mxu0 0
    %265 = vmatpush1.bf16.xpose.msra.mxu0 0
    %266 = vmatprep.subr.bf16.mxu0 0
    %267 = vmatpush1.bf16.xpose.msra.mxu0 0
    %268 = vmatprep.subr.bf16.mxu0 0
    %269 = vmatpush1.bf16.xpose.msra.mxu0 0
    %270 = vmatprep.subr.bf16.mxu0 0
    %271 = vmatpush1.bf16.xpose.msra.mxu0 0
    %272 = vmatprep.subr.bf16.mxu0 0
    %273 = vmatpush1.bf16.xpose.msra.mxu0 0
    %274 = vmatprep.subr.bf16.mxu0 0
    %275 = vmatpush1.bf16.xpose.msra.mxu0 0
    %276 = vmatprep.subr.bf16.mxu0 0
    %277 = vmatpush1.bf16.xpose.msra.mxu0 0
    %278 = vmatprep.subr.bf16.mxu0 0
    %279 = vmatpush1.bf16.xpose.msra.mxu0 0
    %280 = vmatprep.mubr.bf16.mxu0 0
    %281 = vmatmul.mubr.bf16.gmra.mrb[0].mxu0 %v240
    %v282 = vpop.f32.mrb[0].mxu0
    %v283 = vadd.f32 %v238, %v282
    %v284 = vpop.f32.mrb[0].mxu0
    %v285 = vpop.f32.mrb[0].mxu0
    %v286 = vadd.f32 %v238, %v285
    %v287 = vpop.f32.mrb[0].mxu0
    %288 = vmatprep.mubr.bf16.mxu0 0
    %289 = vmatmul.mubr.bf16.gmra.mrb[0].mxu0 %v243
    %v290 = vpop.f32.mrb[0].mxu0
    %v291 = vadd.f32 %v238, %v290
    %v292 = vpop.f32.mrb[0].mxu0
    %v293 = vpop.f32.mrb[0].mxu0
    %v294 = vadd.f32 %v238, %v293
    %v295 = vpop.f32.mrb[0].mxu0
    %296 = vdwg.mxu0
    %vm297 = vcmask 130048
    %v298 = vsel %vm297, %v283, 0.0
    %v299 = vsel %vm297, %v286, 0.0
    %v300 = vadd.f32 %v298, %v299
    %v301 = vsel %vm297, %v291, 0.0
    %v302 = vadd.f32 %v300, %v301
    %v303 = vsel %vm297, %v294, 0.0
    %v304 = vadd.f32 %v302, %v303
    %v305 = vrot.slane %v304, 4
    %v306 = vadd.f32 %v304, %v305
    %v307 = vrot.slane %v306, 2
    %v308 = vadd.f32 %v306, %v307
    %v309 = vrot.slane %v308, 1
    %v310 = vadd.f32 %v308, %v309
    %v311 = vmul.f32 %v310, %v116
    %v312 = vsub.f32 %v283, %v311
    %v313 = vsub.f32 %v286, %v311
    %v314 = vsub.f32 %v291, %v311
    %v315 = vsub.f32 %v294, %v311
    %v316 = vmul.f32 %v312, %v312
    %v317 = vmul.f32 %v313, %v313
    %v318 = vmul.f32 %v314, %v314
    %v319 = vmul.f32 %v315, %v315
    %v320 = vsel %vm297, %v316, 0.0
    %v321 = vsel %vm297, %v317, 0.0
    %v322 = vadd.f32 %v320, %v321
    %v323 = vsel %vm297, %v318, 0.0
    %v324 = vadd.f32 %v322, %v323
    %v325 = vsel %vm297, %v319, 0.0
    %v326 = vadd.f32 %v324, %v325
    %v327 = vrot.slane %v326, 4
    %v328 = vadd.f32 %v326, %v327
    %v329 = vrot.slane %v328, 2
    %v330 = vadd.f32 %v328, %v329
    %v331 = vrot.slane %v330, 1
    %v332 = vadd.f32 %v330, %v331
    %v333 = vmul.f32 %v332, %v116
    %v334 = vadd.f32 %v333, 1e-05
    %v335 = vrsqrt.pop %v334
    %v336 = vmul.f32 %v312, %v335
    %v337 = vmul.f32 %v313, %v335
    %v338 = vmul.f32 %v314, %v335
    %v339 = vmul.f32 %v315, %v335
    %v341 = vlaneseq
    %v342 = vshrl.u32 %v341, 7
    %v343 = vsub.s32 0, %v342
    %v344 = vrot.slane %v97, %v343
    %v346 = vmul.f32 %v336, %v344
    %v347 = vmul.f32 %v337, %v344
    %v348 = vmul.f32 %v338, %v344
    %v349 = vmul.f32 %v339, %v344
    %v351 = vlaneseq
    %v352 = vshrl.u32 %v351, 7
    %v353 = vsub.s32 0, %v352
    %v354 = vrot.slane %v98, %v353
    %v356 = vadd.f32 %v346, %v354
    %v357 = vadd.f32 %v347, %v354
    %v358 = vadd.f32 %v348, %v354
    %v359 = vadd.f32 %v349, %v354
    %v360 = vmax.f32 %v356, 0.0
    %v361 = vmax.f32 %v357, 0.0
    %v362 = vmax.f32 %v358, 0.0
    %v363 = vmax.f32 %v359, 0.0
    %v364 = vsel %vm297, %v360, 0.0
    %v365 = vrot.slane %v364, 4
    %v366 = vadd.f32 %v364, %v365
    %v367 = vrot.slane %v366, 2
    %v368 = vadd.f32 %v366, %v367
    %v369 = vrot.slane %v368, 1
    %v370 = vadd.f32 %v368, %v369
    %v371 = vrcp.pop 8.0
    %v372 = vmul.f32 %v370, %v371
    %v373 = vsel %vm297, %v361, 0.0
    %v374 = vrot.slane %v373, 4
    %v375 = vadd.f32 %v373, %v374
    %v376 = vrot.slane %v375, 2
    %v377 = vadd.f32 %v375, %v376
    %v378 = vrot.slane %v377, 1
    %v379 = vadd.f32 %v377, %v378
    %v380 = vmul.f32 %v379, %v371
    %v381 = vsel %vm297, %v362, 0.0
    %v382 = vrot.slane %v381, 4
    %v383 = vadd.f32 %v381, %v382
    %v384 = vrot.slane %v383, 2
    %v385 = vadd.f32 %v383, %v384
    %v386 = vrot.slane %v385, 1
    %v387 = vadd.f32 %v385, %v386
    %v388 = vmul.f32 %v387, %v371
    %v389 = vsel %vm297, %v363, 0.0
    %v390 = vrot.slane %v389, 4
    %v391 = vadd.f32 %v389, %v390
    %v392 = vrot.slane %v391, 2
    %v393 = vadd.f32 %v391, %v392
    %v394 = vrot.slane %v393, 1
    %v395 = vadd.f32 %v393, %v394
    %v396 = vmul.f32 %v395, %v371
    %vm397 = vcmask 1040384
    %v398 = vsel %vm397, %v372, %v380
    %vm399 = vcmask 1041408
    %v400 = vsel %vm399, %v398, %v388
    %vm401 = vcmask 1042432
    %v402 = vsel %vm401, %v400, %v396
    %v403 = vpack.c.bf16 %v402, %v402
    %v404 = vpack.c.bf16 %v100, %v99
    %v406 = vlaneseq
    %v407 = vshrl.u32 %v406, 7
    %v408 = vsub.s32 0, %v407
    %v409 = vrot.slane %v101, %v408
    %v412 = vsel %vm297, %v403, 0
    %414 = vmatprep.subr.bf16.mxu0 0
    %415 = vmatpush1.bf16.msra.mxu0 %v404
    %416 = vmatprep.subr.bf16.mxu0 0
    %417 = vmatpush1.bf16.msra.mxu0 0
    %418 = vmatprep.subr.bf16.mxu0 0
    %419 = vmatpush1.bf16.msra.mxu0 0
    %420 = vmatprep.subr.bf16.mxu0 0
    %421 = vmatpush1.bf16.msra.mxu0 0
    %422 = vmatprep.subr.bf16.mxu0 0
    %423 = vmatpush1.bf16.msra.mxu0 0
    %424 = vmatprep.subr.bf16.mxu0 0
    %425 = vmatpush1.bf16.msra.mxu0 0
    %426 = vmatprep.subr.bf16.mxu0 0
    %427 = vmatpush1.bf16.msra.mxu0 0
    %428 = vmatprep.subr.bf16.mxu0 0
    %429 = vmatpush1.bf16.msra.mxu0 0
    %430 = vmatprep.subr.bf16.mxu0 0
    %431 = vmatpush1.bf16.msra.mxu0 0
    %432 = vmatprep.subr.bf16.mxu0 0
    %433 = vmatpush1.bf16.msra.mxu0 0
    %434 = vmatprep.subr.bf16.mxu0 0
    %435 = vmatpush1.bf16.msra.mxu0 0
    %436 = vmatprep.subr.bf16.mxu0 0
    %437 = vmatpush1.bf16.msra.mxu0 0
    %438 = vmatprep.subr.bf16.mxu0 0
    %439 = vmatpush1.bf16.msra.mxu0 0
    %440 = vmatprep.subr.bf16.mxu0 0
    %441 = vmatpush1.bf16.msra.mxu0 0
    %442 = vmatprep.subr.bf16.mxu0 0
    %443 = vmatpush1.bf16.msra.mxu0 0
    %444 = vmatprep.subr.bf16.mxu0 0
    %445 = vmatpush1.bf16.msra.mxu0 0
    %446 = vmatprep.mubr.bf16.mxu0 0
    %447 = vmatmul.mubr.bf16.gmra.mrb[0].mxu0 %v412
    %v448 = vpop.f32.mrb[0].mxu0
    %v449 = vadd.f32 %v409, %v448
    %v450 = vpop.f32.mrb[0].mxu0
    %v451 = vpop.f32.mrb[0].mxu0
    %v452 = vpop.f32.mrb[0].mxu0
    %453 = vdwg.mxu0
    %v454 = vld [vmem:[%s1] sm:$0xff]
    %v455 = vld [vmem:[%s1 + $0x8] sm:$0xff]
    %v456 = vld [vmem:[%s1 + $0x10] sm:$0xff]
    %v457 = vld [vmem:[%s1 + $0x18] sm:$0xff]
    %v458 = vld [vmem:[%s10] sm:$0x1]
    %v459 = vld [vmem:[%s11] sm:$0x1]
    %v460 = vld [vmem:[%s12] sm:$0xff]
    %v461 = vld [vmem:[%s12 + $0x8] sm:$0xff]
    %v462 = vld [vmem:[%s13] sm:$0x1]
    %v463 = vld [vmem:[%s14] sm:$0x1]
    %v464 = vld [vmem:[%s15] sm:$0x1]
    %v465 = vld [vmem:[%s16] sm:$0xff]
    %v466 = vld [vmem:[%s16 + $0x8] sm:$0xff]
    %v467 = vld [vmem:[%s17] sm:$0x1]
    %v468 = vsel %vm297, %v454, 0.0
    %v469 = vsel %vm297, %v455, 0.0
    %v470 = vadd.f32 %v468, %v469
    %v471 = vsel %vm297, %v456, 0.0
    %v472 = vadd.f32 %v470, %v471
    %v473 = vsel %vm297, %v457, 0.0
    %v474 = vadd.f32 %v472, %v473
    %v475 = vrot.slane %v474, 4
    %v476 = vadd.f32 %v474, %v475
    %v477 = vrot.slane %v476, 2
    %v478 = vadd.f32 %v476, %v477
    %v479 = vrot.slane %v478, 1
    %v480 = vadd.f32 %v478, %v479
    %v481 = vmul.f32 %v480, %v116
    %v482 = vsub.f32 %v454, %v481
    %v483 = vsub.f32 %v455, %v481
    %v484 = vsub.f32 %v456, %v481
    %v485 = vsub.f32 %v457, %v481
    %v486 = vmul.f32 %v482, %v482
    %v487 = vmul.f32 %v483, %v483
    %v488 = vmul.f32 %v484, %v484
    %v489 = vmul.f32 %v485, %v485
    %v490 = vsel %vm297, %v486, 0.0
    %v491 = vsel %vm297, %v487, 0.0
    %v492 = vadd.f32 %v490, %v491
    %v493 = vsel %vm297, %v488, 0.0
    %v494 = vadd.f32 %v492, %v493
    %v495 = vsel %vm297, %v489, 0.0
    %v496 = vadd.f32 %v494, %v495
    %v497 = vrot.slane %v496, 4
    %v498 = vadd.f32 %v496, %v497
    %v499 = vrot.slane %v498, 2
    %v500 = vadd.f32 %v498, %v499
    %v501 = vrot.slane %v500, 1
    %v502 = vadd.f32 %v500, %v501
    %v503 = vmul.f32 %v502, %v116
    %v504 = vadd.f32 %v503, 1e-05
    %v505 = vrsqrt.pop %v504
    %v506 = vmul.f32 %v458, %v505
    %v507 = vmul.f32 %v481, %v506
    %v508 = vsub.f32 %v459, %v507
    %v510 = vlaneseq
    %v511 = vshrl.u32 %v510, 7
    %v512 = vsub.s32 0, %v511
    %v513 = vrot.slane %v506, %v512
    %v515 = vmul.f32 %v460, %v513
    %v516 = vmul.f32 %v461, %v513
    %v518 = vsel %vm297, %v508, 0
    %v521 = vsel %vm297, %v460, 0
    %v524 = vsel %vm297, %v461, 0
    %526 = vmatprep.subr.mxu0 0.0
    %527 = vmatpush1.xpose.msra.mxu0 %v521
    %528 = vmatprep.subr.mxu0 0.0
    %529 = vmatpush1.xpose.msra.mxu0 %v524
    %530 = vmatprep.subr.mxu0 0.0
    %531 = vmatpush1.xpose.msra.mxu0 0.0
    %532 = vmatprep.subr.mxu0 0.0
    %533 = vmatpush1.xpose.msra.mxu0 0.0
    %534 = vmatprep.subr.mxu0 0.0
    %535 = vmatpush1.xpose.msra.mxu0 0.0
    %536 = vmatprep.subr.mxu0 0.0
    %537 = vmatpush1.xpose.msra.mxu0 0.0
    %538 = vmatprep.subr.mxu0 0.0
    %539 = vmatpush1.xpose.msra.mxu0 0.0
    %540 = vmatprep.subr.mxu0 0.0
    %541 = vmatpush1.xpose.msra.mxu0 0.0
    %542 = vmatprep.subr.mxu0 0.0
    %543 = vmatpush1.xpose.msra.mxu0 0.0
    %544 = vmatprep.subr.mxu0 0.0
    %545 = vmatpush1.xpose.msra.mxu0 0.0
    %546 = vmatprep.subr.mxu0 0.0
    %547 = vmatpush1.xpose.msra.mxu0 0.0
    %548 = vmatprep.subr.mxu0 0.0
    %549 = vmatpush1.xpose.msra.mxu0 0.0
    %550 = vmatprep.subr.mxu0 0.0
    %551 = vmatpush1.xpose.msra.mxu0 0.0
    %552 = vmatprep.subr.mxu0 0.0
    %553 = vmatpush1.xpose.msra.mxu0 0.0
    %554 = vmatprep.subr.mxu0 0.0
    %555 = vmatpush1.xpose.msra.mxu0 0.0
    %556 = vmatprep.subr.mxu0 0.0
    %557 = vmatpush1.xpose.msra.mxu0 0.0
    %558 = vmatprep.subr.mxu0 0.0
    %559 = vmatpush1.xpose.msra.mxu0 0.0
    %560 = vmatprep.subr.mxu0 0.0
    %561 = vmatpush1.xpose.msra.mxu0 0.0
    %562 = vmatprep.subr.mxu0 0.0
    %563 = vmatpush1.xpose.msra.mxu0 0.0
    %564 = vmatprep.subr.mxu0 0.0
    %565 = vmatpush1.xpose.msra.mxu0 0.0
    %566 = vmatprep.subr.mxu0 0.0
    %567 = vmatpush1.xpose.msra.mxu0 0.0
    %568 = vmatprep.subr.mxu0 0.0
    %569 = vmatpush1.xpose.msra.mxu0 0.0
    %570 = vmatprep.subr.mxu0 0.0
    %571 = vmatpush1.xpose.msra.mxu0 0.0
    %572 = vmatprep.subr.mxu0 0.0
    %573 = vmatpush1.xpose.msra.mxu0 0.0
    %574 = vmatprep.subr.mxu0 0.0
    %575 = vmatpush1.xpose.msra.mxu0 0.0
    %576 = vmatprep.subr.mxu0 0.0
    %577 = vmatpush1.xpose.msra.mxu0 0.0
    %578 = vmatprep.subr.mxu0 0.0
    %579 = vmatpush1.xpose.msra.mxu0 0.0
    %580 = vmatprep.subr.mxu0 0.0
    %581 = vmatpush1.xpose.msra.mxu0 0.0
    %582 = vmatprep.subr.mxu0 0.0
    %583 = vmatpush1.xpose.msra.mxu0 0.0
    %584 = vmatprep.subr.mxu0 0.0
    %585 = vmatpush1.xpose.msra.mxu0 0.0
    %586 = vmatprep.subr.mxu0 0.0
    %587 = vmatpush1.xpose.msra.mxu0 0.0
    %588 = vmatprep.subr.mxu0 0.0
    %589 = vmatpush1.xpose.msra.mxu0 0.0
    %590 = vmatprep.mubr.f32.mxu0 0.0
    %591 = vmatmul.mubr.f32.gmra.mrb[0].mxu0 %v518
    %v592 = vpop.f32.mrb[0].mxu0
    %v593 = vadd.f32 %v462, %v592
    %v594 = vpop.f32.mrb[0].mxu0
    %595 = vdwg.mxu0
    %v596 = vpack.c.bf16 %v455, %v454
    %v597 = vpack.c.bf16 %v457, %v456
    %v598 = vpack.c.bf16 %v516, %v515
    %v599 = vlaneseq
    %v600 = vshrl.u32 %v599, 7
    %v601 = vsub.s32 0, %v600
    %v602 = vrot.slane %v593, %v601
    %v604 = vsel %vm297, %v596, 0
    %v607 = vsel %vm297, %v597, 0
    %v610 = vsel %vm297, %v598, 0
    %612 = vmatprep.subr.bf16.mxu0 0
    %613 = vmatpush1.bf16.xpose.msra.mxu0 %v610
    %614 = vmatprep.subr.bf16.mxu0 0
    %615 = vmatpush1.bf16.xpose.msra.mxu0 0
    %616 = vmatprep.subr.bf16.mxu0 0
    %617 = vmatpush1.bf16.xpose.msra.mxu0 0
    %618 = vmatprep.subr.bf16.mxu0 0
    %619 = vmatpush1.bf16.xpose.msra.mxu0 0
    %620 = vmatprep.subr.bf16.mxu0 0
    %621 = vmatpush1.bf16.xpose.msra.mxu0 0
    %622 = vmatprep.subr.bf16.mxu0 0
    %623 = vmatpush1.bf16.xpose.msra.mxu0 0
    %624 = vmatprep.subr.bf16.mxu0 0
    %625 = vmatpush1.bf16.xpose.msra.mxu0 0
    %626 = vmatprep.subr.bf16.mxu0 0
    %627 = vmatpush1.bf16.xpose.msra.mxu0 0
    %628 = vmatprep.subr.bf16.mxu0 0
    %629 = vmatpush1.bf16.xpose.msra.mxu0 0
    %630 = vmatprep.subr.bf16.mxu0 0
    %631 = vmatpush1.bf16.xpose.msra.mxu0 0
    %632 = vmatprep.subr.bf16.mxu0 0
    %633 = vmatpush1.bf16.xpose.msra.mxu0 0
    %634 = vmatprep.subr.bf16.mxu0 0
    %635 = vmatpush1.bf16.xpose.msra.mxu0 0
    %636 = vmatprep.subr.bf16.mxu0 0
    %637 = vmatpush1.bf16.xpose.msra.mxu0 0
    %638 = vmatprep.subr.bf16.mxu0 0
    %639 = vmatpush1.bf16.xpose.msra.mxu0 0
    %640 = vmatprep.subr.bf16.mxu0 0
    %641 = vmatpush1.bf16.xpose.msra.mxu0 0
    %642 = vmatprep.subr.bf16.mxu0 0
    %643 = vmatpush1.bf16.xpose.msra.mxu0 0
    %644 = vmatprep.mubr.bf16.mxu0 0
    %645 = vmatmul.mubr.bf16.gmra.mrb[0].mxu0 %v604
    %v646 = vpop.f32.mrb[0].mxu0
    %v647 = vadd.f32 %v602, %v646
    %v648 = vpop.f32.mrb[0].mxu0
    %v649 = vpop.f32.mrb[0].mxu0
    %v650 = vadd.f32 %v602, %v649
    %v651 = vpop.f32.mrb[0].mxu0
    %652 = vmatprep.mubr.bf16.mxu0 0
    %653 = vmatmul.mubr.bf16.gmra.mrb[0].mxu0 %v607
    %v654 = vpop.f32.mrb[0].mxu0
    %v655 = vadd.f32 %v602, %v654
    %v656 = vpop.f32.mrb[0].mxu0
    %v657 = vpop.f32.mrb[0].mxu0
    %v658 = vadd.f32 %v602, %v657
    %v659 = vpop.f32.mrb[0].mxu0
    %660 = vdwg.mxu0
    %v661 = vsel %vm297, %v647, 0.0
    %v662 = vsel %vm297, %v650, 0.0
    %v663 = vadd.f32 %v661, %v662
    %v664 = vsel %vm297, %v655, 0.0
    %v665 = vadd.f32 %v663, %v664
    %v666 = vsel %vm297, %v658, 0.0
    %v667 = vadd.f32 %v665, %v666
    %v668 = vrot.slane %v667, 4
    %v669 = vadd.f32 %v667, %v668
    %v670 = vrot.slane %v669, 2
    %v671 = vadd.f32 %v669, %v670
    %v672 = vrot.slane %v671, 1
    %v673 = vadd.f32 %v671, %v672
    %v674 = vmul.f32 %v673, %v116
    %v675 = vsub.f32 %v647, %v674
    %v676 = vsub.f32 %v650, %v674
    %v677 = vsub.f32 %v655, %v674
    %v678 = vsub.f32 %v658, %v674
    %v679 = vmul.f32 %v675, %v675
    %v680 = vmul.f32 %v676, %v676
    %v681 = vmul.f32 %v677, %v677
    %v682 = vmul.f32 %v678, %v678
    %v683 = vsel %vm297, %v679, 0.0
    %v684 = vsel %vm297, %v680, 0.0
    %v685 = vadd.f32 %v683, %v684
    %v686 = vsel %vm297, %v681, 0.0
    %v687 = vadd.f32 %v685, %v686
    %v688 = vsel %vm297, %v682, 0.0
    %v689 = vadd.f32 %v687, %v688
    %v690 = vrot.slane %v689, 4
    %v691 = vadd.f32 %v689, %v690
    %v692 = vrot.slane %v691, 2
    %v693 = vadd.f32 %v691, %v692
    %v694 = vrot.slane %v693, 1
    %v695 = vadd.f32 %v693, %v694
    %v696 = vmul.f32 %v695, %v116
    %v697 = vadd.f32 %v696, 1e-05
    %v698 = vrsqrt.pop %v697
    %v699 = vmul.f32 %v675, %v698
    %v700 = vmul.f32 %v676, %v698
    %v701 = vmul.f32 %v677, %v698
    %v702 = vmul.f32 %v678, %v698
    %v704 = vlaneseq
    %v705 = vshrl.u32 %v704, 7
    %v706 = vsub.s32 0, %v705
    %v707 = vrot.slane %v463, %v706
    %v709 = vmul.f32 %v699, %v707
    %v710 = vmul.f32 %v700, %v707
    %v711 = vmul.f32 %v701, %v707
    %v712 = vmul.f32 %v702, %v707
    %v714 = vlaneseq
    %v715 = vshrl.u32 %v714, 7
    %v716 = vsub.s32 0, %v715
    %v717 = vrot.slane %v464, %v716
    %v719 = vadd.f32 %v709, %v717
    %v720 = vadd.f32 %v710, %v717
    %v721 = vadd.f32 %v711, %v717
    %v722 = vadd.f32 %v712, %v717
    %v723 = vmax.f32 %v719, 0.0
    %v724 = vmax.f32 %v720, 0.0
    %v725 = vmax.f32 %v721, 0.0
    %v726 = vmax.f32 %v722, 0.0
    %v727 = vsel %vm297, %v723, 0.0
    %v728 = vrot.slane %v727, 4
    %v729 = vadd.f32 %v727, %v728
    %v730 = vrot.slane %v729, 2
    %v731 = vadd.f32 %v729, %v730
    %v732 = vrot.slane %v731, 1
    %v733 = vadd.f32 %v731, %v732
    %v734 = vmul.f32 %v733, %v371
    %v735 = vsel %vm297, %v724, 0.0
    %v736 = vrot.slane %v735, 4
    %v737 = vadd.f32 %v735, %v736
    %v738 = vrot.slane %v737, 2
    %v739 = vadd.f32 %v737, %v738
    %v740 = vrot.slane %v739, 1
    %v741 = vadd.f32 %v739, %v740
    %v742 = vmul.f32 %v741, %v371
    %v743 = vsel %vm297, %v725, 0.0
    %v744 = vrot.slane %v743, 4
    %v745 = vadd.f32 %v743, %v744
    %v746 = vrot.slane %v745, 2
    %v747 = vadd.f32 %v745, %v746
    %v748 = vrot.slane %v747, 1
    %v749 = vadd.f32 %v747, %v748
    %v750 = vmul.f32 %v749, %v371
    %v751 = vsel %vm297, %v726, 0.0
    %v752 = vrot.slane %v751, 4
    %v753 = vadd.f32 %v751, %v752
    %v754 = vrot.slane %v753, 2
    %v755 = vadd.f32 %v753, %v754
    %v756 = vrot.slane %v755, 1
    %v757 = vadd.f32 %v755, %v756
    %v758 = vmul.f32 %v757, %v371
    %v759 = vsel %vm397, %v734, %v742
    %v760 = vsel %vm399, %v759, %v750
    %v761 = vsel %vm401, %v760, %v758
    %v762 = vpack.c.bf16 %v761, %v761
    %v763 = vpack.c.bf16 %v466, %v465
    %v765 = vlaneseq
    %v766 = vshrl.u32 %v765, 7
    %v767 = vsub.s32 0, %v766
    %v768 = vrot.slane %v467, %v767
    %v771 = vsel %vm297, %v762, 0
    %773 = vmatprep.subr.bf16.mxu0 0
    %774 = vmatpush1.bf16.msra.mxu0 %v763
    %775 = vmatprep.subr.bf16.mxu0 0
    %776 = vmatpush1.bf16.msra.mxu0 0
    %777 = vmatprep.subr.bf16.mxu0 0
    %778 = vmatpush1.bf16.msra.mxu0 0
    %779 = vmatprep.subr.bf16.mxu0 0
    %780 = vmatpush1.bf16.msra.mxu0 0
    %781 = vmatprep.subr.bf16.mxu0 0
    %782 = vmatpush1.bf16.msra.mxu0 0
    %783 = vmatprep.subr.bf16.mxu0 0
    %784 = vmatpush1.bf16.msra.mxu0 0
    %785 = vmatprep.subr.bf16.mxu0 0
    %786 = vmatpush1.bf16.msra.mxu0 0
    %787 = vmatprep.subr.bf16.mxu0 0
    %788 = vmatpush1.bf16.msra.mxu0 0
    %789 = vmatprep.subr.bf16.mxu0 0
    %790 = vmatpush1.bf16.msra.mxu0 0
    %791 = vmatprep.subr.bf16.mxu0 0
    %792 = vmatpush1.bf16.msra.mxu0 0
    %793 = vmatprep.subr.bf16.mxu0 0
    %794 = vmatpush1.bf16.msra.mxu0 0
    %795 = vmatprep.subr.bf16.mxu0 0
    %796 = vmatpush1.bf16.msra.mxu0 0
    %797 = vmatprep.subr.bf16.mxu0 0
    %798 = vmatpush1.bf16.msra.mxu0 0
    %799 = vmatprep.subr.bf16.mxu0 0
    %800 = vmatpush1.bf16.msra.mxu0 0
    %801 = vmatprep.subr.bf16.mxu0 0
    %802 = vmatpush1.bf16.msra.mxu0 0
    %803 = vmatprep.subr.bf16.mxu0 0
    %804 = vmatpush1.bf16.msra.mxu0 0
    %805 = vmatprep.mubr.bf16.mxu0 0
    %806 = vmatmul.mubr.bf16.gmra.mrb[0].mxu0 %v771
    %v807 = vpop.f32.mrb[0].mxu0
    %v808 = vadd.f32 %v768, %v807
    %v809 = vpop.f32.mrb[0].mxu0
    %v810 = vpop.f32.mrb[0].mxu0
    %v811 = vpop.f32.mrb[0].mxu0
    %812 = vdwg.mxu0
    %v813 = vld [vmem:[%s18] sm:$0xff]
    %v814 = vld [vmem:[%s18 + $0x8] sm:$0xff]
    %v815 = vld [vmem:[%s18 + $0x10] sm:$0xff]
    %v816 = vld [vmem:[%s18 + $0x18] sm:$0xff]
    %v817 = vld [vmem:[%s19] sm:$0x1]
    %v818 = vld [vmem:[%s20] sm:$0x1]
    %v819 = vld [vmem:[%s21] sm:$0x1]
    %v820 = vld [vmem:[%s22] sm:$0xff]
    %v821 = vld [vmem:[%s22 + $0x8] sm:$0xff]
    %v822 = vld [vmem:[%s22 + $0x10] sm:$0xff]
    %v823 = vld [vmem:[%s22 + $0x18] sm:$0xff]
    %v824 = vpack.c.bf16 %v449, %v449
    %v825 = vpack.c.bf16 %v814, %v813
    %v826 = vpack.c.bf16 %v816, %v815
    %v828 = vlaneseq
    %v829 = vshrl.u32 %v828, 7
    %v830 = vsub.s32 0, %v829
    %v831 = vrot.slane %v817, %v830
    %vm833 = vcmask 261120
    %v835 = vsel %vm833, %v824, 0
    %837 = vmatprep.subr.bf16.mxu0 0
    %838 = vmatpush1.bf16.msra.mxu0 %v825
    %839 = vmatprep.subr.bf16.mxu0 0
    %840 = vmatpush1.bf16.msra.mxu0 %v826
    %841 = vmatprep.subr.bf16.mxu0 0
    %842 = vmatpush1.bf16.msra.mxu0 0
    %843 = vmatprep.subr.bf16.mxu0 0
    %844 = vmatpush1.bf16.msra.mxu0 0
    %845 = vmatprep.subr.bf16.mxu0 0
    %846 = vmatpush1.bf16.msra.mxu0 0
    %847 = vmatprep.subr.bf16.mxu0 0
    %848 = vmatpush1.bf16.msra.mxu0 0
    %849 = vmatprep.subr.bf16.mxu0 0
    %850 = vmatpush1.bf16.msra.mxu0 0
    %851 = vmatprep.subr.bf16.mxu0 0
    %852 = vmatpush1.bf16.msra.mxu0 0
    %853 = vmatprep.subr.bf16.mxu0 0
    %854 = vmatpush1.bf16.msra.mxu0 0
    %855 = vmatprep.subr.bf16.mxu0 0
    %856 = vmatpush1.bf16.msra.mxu0 0
    %857 = vmatprep.subr.bf16.mxu0 0
    %858 = vmatpush1.bf16.msra.mxu0 0
    %859 = vmatprep.subr.bf16.mxu0 0
    %860 = vmatpush1.bf16.msra.mxu0 0
    %861 = vmatprep.subr.bf16.mxu0 0
    %862 = vmatpush1.bf16.msra.mxu0 0
    %863 = vmatprep.subr.bf16.mxu0 0
    %864 = vmatpush1.bf16.msra.mxu0 0
    %865 = vmatprep.subr.bf16.mxu0 0
    %866 = vmatpush1.bf16.msra.mxu0 0
    %867 = vmatprep.subr.bf16.mxu0 0
    %868 = vmatpush1.bf16.msra.mxu0 0
    %869 = vmatprep.mubr.bf16.mxu0 0
    %870 = vmatmul.mubr.bf16.gmra.mrb[0].mxu0 %v835
    %v871 = vpop.f32.mrb[0].mxu0
    %v872 = vadd.f32 %v831, %v871
    %v873 = vpop.f32.mrb[0].mxu0
    %v874 = vpop.f32.mrb[0].mxu0
    %v875 = vpop.f32.mrb[0].mxu0
    %876 = vdwg.mxu0
    %vm877 = vcmask 257024
    %v878 = vsel %vm877, %v872, 0.0
    %v879 = vrot.slane %v878, 4
    %v880 = vadd.f32 %v878, %v879
    %v881 = vrot.slane %v880, 2
    %v882 = vadd.f32 %v880, %v881
    %v883 = vrot.slane %v882, 1
    %v884 = vadd.f32 %v882, %v883
    %v885 = vrcp.pop 4.0
    %v886 = vmul.f32 %v884, %v885
    %v887 = vsub.f32 %v872, %v886
    %v888 = vmul.f32 %v887, %v887
    %v889 = vsel %vm877, %v888, 0.0
    %v890 = vrot.slane %v889, 4
    %v891 = vadd.f32 %v889, %v890
    %v892 = vrot.slane %v891, 2
    %v893 = vadd.f32 %v891, %v892
    %v894 = vrot.slane %v893, 1
    %v895 = vadd.f32 %v893, %v894
    %v896 = vmul.f32 %v895, %v885
    %v897 = vadd.f32 %v896, 1e-05
    %v898 = vrsqrt.pop %v897
    %v899 = vmul.f32 %v887, %v898
    %v901 = vlaneseq
    %v902 = vshrl.u32 %v901, 7
    %v903 = vsub.s32 0, %v902
    %v904 = vrot.slane %v818, %v903
    %v906 = vmul.f32 %v899, %v904
    %v908 = vlaneseq
    %v909 = vshrl.u32 %v908, 7
    %v910 = vsub.s32 0, %v909
    %v911 = vrot.slane %v819, %v910
    %v913 = vadd.f32 %v906, %v911
    %v914 = vmax.f32 %v913, 0.0
    %v915 = vpack.c.bf16 %v914, %v914
    %v916 = vpack.c.bf16 %v821, %v820
    %v917 = vpack.c.bf16 %v823, %v822
    %v919 = vsel %vm833, %v915, 0
    %921 = vmatprep.subr.bf16.mxu0 0
    %922 = vmatpush1.bf16.msra.mxu0 %v916
    %923 = vmatprep.subr.bf16.mxu0 0
    %924 = vmatpush1.bf16.msra.mxu0 %v917
    %925 = vmatprep.subr.bf16.mxu0 0
    %926 = vmatpush1.bf16.msra.mxu0 0
    %927 = vmatprep.subr.bf16.mxu0 0
    %928 = vmatpush1.bf16.msra.mxu0 0
    %929 = vmatprep.subr.bf16.mxu0 0
    %930 = vmatpush1.bf16.msra.mxu0 0
    %931 = vmatprep.subr.bf16.mxu0 0
    %932 = vmatpush1.bf16.msra.mxu0 0
    %933 = vmatprep.subr.bf16.mxu0 0
    %934 = vmatpush1.bf16.msra.mxu0 0
    %935 = vmatprep.subr.bf16.mxu0 0
    %936 = vmatpush1.bf16.msra.mxu0 0
    %937 = vmatprep.subr.bf16.mxu0 0
    %938 = vmatpush1.bf16.msra.mxu0 0
    %939 = vmatprep.subr.bf16.mxu0 0
    %940 = vmatpush1.bf16.msra.mxu0 0
    %941 = vmatprep.subr.bf16.mxu0 0
    %942 = vmatpush1.bf16.msra.mxu0 0
    %943 = vmatprep.subr.bf16.mxu0 0
    %944 = vmatpush1.bf16.msra.mxu0 0
    %945 = vmatprep.subr.bf16.mxu0 0
    %946 = vmatpush1.bf16.msra.mxu0 0
    %947 = vmatprep.subr.bf16.mxu0 0
    %948 = vmatpush1.bf16.msra.mxu0 0
    %949 = vmatprep.subr.bf16.mxu0 0
    %950 = vmatpush1.bf16.msra.mxu0 0
    %951 = vmatprep.subr.bf16.mxu0 0
    %952 = vmatpush1.bf16.msra.mxu0 0
    %953 = vmatprep.mubr.bf16.mxu0 0
    %954 = vmatmul.mubr.bf16.gmra.mrb[0].mxu0 %v919
    %v955 = vpop.f32.mrb[0].mxu0
    %v956 = vadd.f32 0.0, %v955
    %v957 = vpop.f32.mrb[0].mxu0
    %v958 = vpop.f32.mrb[0].mxu0
    %v959 = vpop.f32.mrb[0].mxu0
    %960 = vdwg.mxu0
    %v961 = vpack.c.bf16 %v808, %v808
    %v963 = vsel %vm833, %v961, 0
    %965 = vmatprep.subr.bf16.mxu0 0
    %966 = vmatpush1.bf16.msra.mxu0 %v825
    %967 = vmatprep.subr.bf16.mxu0 0
    %968 = vmatpush1.bf16.msra.mxu0 %v826
    %969 = vmatprep.subr.bf16.mxu0 0
    %970 = vmatpush1.bf16.msra.mxu0 0
    %971 = vmatprep.subr.bf16.mxu0 0
    %972 = vmatpush1.bf16.msra.mxu0 0
    %973 = vmatprep.subr.bf16.mxu0 0
    %974 = vmatpush1.bf16.msra.mxu0 0
    %975 = vmatprep.subr.bf16.mxu0 0
    %976 = vmatpush1.bf16.msra.mxu0 0
    %977 = vmatprep.subr.bf16.mxu0 0
    %978 = vmatpush1.bf16.msra.mxu0 0
    %979 = vmatprep.subr.bf16.mxu0 0
    %980 = vmatpush1.bf16.msra.mxu0 0
    %981 = vmatprep.subr.bf16.mxu0 0
    %982 = vmatpush1.bf16.msra.mxu0 0
    %983 = vmatprep.subr.bf16.mxu0 0
    %984 = vmatpush1.bf16.msra.mxu0 0
    %985 = vmatprep.subr.bf16.mxu0 0
    %986 = vmatpush1.bf16.msra.mxu0 0
    %987 = vmatprep.subr.bf16.mxu0 0
    %988 = vmatpush1.bf16.msra.mxu0 0
    %989 = vmatprep.subr.bf16.mxu0 0
    %990 = vmatpush1.bf16.msra.mxu0 0
    %991 = vmatprep.subr.bf16.mxu0 0
    %992 = vmatpush1.bf16.msra.mxu0 0
    %993 = vmatprep.subr.bf16.mxu0 0
    %994 = vmatpush1.bf16.msra.mxu0 0
    %995 = vmatprep.subr.bf16.mxu0 0
    %996 = vmatpush1.bf16.msra.mxu0 0
    %997 = vmatprep.mubr.bf16.mxu0 0
    %998 = vmatmul.mubr.bf16.gmra.mrb[0].mxu0 %v963
    %v999 = vpop.f32.mrb[0].mxu0
    %v1000 = vadd.f32 %v831, %v999
    %v1001 = vpop.f32.mrb[0].mxu0
    %v1002 = vpop.f32.mrb[0].mxu0
    %v1003 = vpop.f32.mrb[0].mxu0
    %1004 = vdwg.mxu0
    %v1005 = vsel %vm877, %v1000, 0.0
    %v1006 = vrot.slane %v1005, 4
    %v1007 = vadd.f32 %v1005, %v1006
    %v1008 = vrot.slane %v1007, 2
    %v1009 = vadd.f32 %v1007, %v1008
    %v1010 = vrot.slane %v1009, 1
    %v1011 = vadd.f32 %v1009, %v1010
    %v1012 = vmul.f32 %v1011, %v885
    %v1013 = vsub.f32 %v1000, %v1012
    %v1014 = vmul.f32 %v1013, %v1013
    %v1015 = vsel %vm877, %v1014, 0.0
    %v1016 = vrot.slane %v1015, 4
    %v1017 = vadd.f32 %v1015, %v1016
    %v1018 = vrot.slane %v1017, 2
    %v1019 = vadd.f32 %v1017, %v1018
    %v1020 = vrot.slane %v1019, 1
    %v1021 = vadd.f32 %v1019, %v1020
    %v1022 = vmul.f32 %v1021, %v885
    %v1023 = vadd.f32 %v1022, 1e-05
    %v1024 = vrsqrt.pop %v1023
    %v1025 = vmul.f32 %v1013, %v1024
    %v1026 = vmul.f32 %v1025, %v904
    %v1027 = vadd.f32 %v1026, %v911
    %v1028 = vmax.f32 %v1027, 0.0
    %v1029 = vpack.c.bf16 %v1028, %v1028
    %v1031 = vsel %vm833, %v1029, 0
    %1033 = vmatprep.subr.bf16.mxu0 0
    %1034 = vmatpush1.bf16.msra.mxu0 %v916
    %1035 = vmatprep.subr.bf16.mxu0 0
    %1036 = vmatpush1.bf16.msra.mxu0 %v917
    %1037 = vmatprep.subr.bf16.mxu0 0
    %1038 = vmatpush1.bf16.msra.mxu0 0
    %1039 = vmatprep.subr.bf16.mxu0 0
    %1040 = vmatpush1.bf16.msra.mxu0 0
    %1041 = vmatprep.subr.bf16.mxu0 0
    %1042 = vmatpush1.bf16.msra.mxu0 0
    %1043 = vmatprep.subr.bf16.mxu0 0
    %1044 = vmatpush1.bf16.msra.mxu0 0
    %1045 = vmatprep.subr.bf16.mxu0 0
    %1046 = vmatpush1.bf16.msra.mxu0 0
    %1047 = vmatprep.subr.bf16.mxu0 0
    %1048 = vmatpush1.bf16.msra.mxu0 0
    %1049 = vmatprep.subr.bf16.mxu0 0
    %1050 = vmatpush1.bf16.msra.mxu0 0
    %1051 = vmatprep.subr.bf16.mxu0 0
    %1052 = vmatpush1.bf16.msra.mxu0 0
    %1053 = vmatprep.subr.bf16.mxu0 0
    %1054 = vmatpush1.bf16.msra.mxu0 0
    %1055 = vmatprep.subr.bf16.mxu0 0
    %1056 = vmatpush1.bf16.msra.mxu0 0
    %1057 = vmatprep.subr.bf16.mxu0 0
    %1058 = vmatpush1.bf16.msra.mxu0 0
    %1059 = vmatprep.subr.bf16.mxu0 0
    %1060 = vmatpush1.bf16.msra.mxu0 0
    %1061 = vmatprep.subr.bf16.mxu0 0
    %1062 = vmatpush1.bf16.msra.mxu0 0
    %1063 = vmatprep.subr.bf16.mxu0 0
    %1064 = vmatpush1.bf16.msra.mxu0 0
    %1065 = vmatprep.mubr.bf16.mxu0 0
    %1066 = vmatmul.mubr.bf16.gmra.mrb[0].mxu0 %v1031
    %v1067 = vpop.f32.mrb[0].mxu0
    %v1068 = vadd.f32 0.0, %v1067
    %v1069 = vpop.f32.mrb[0].mxu0
    %v1070 = vpop.f32.mrb[0].mxu0
    %v1071 = vpop.f32.mrb[0].mxu0
    %1072 = vdwg.mxu0
    %v1073 = vsub.f32 %v956, %v1068
    %v1074 = vmul.f32 %v1073, %v1073
    %v1075 = vsel %vm877, %v1074, 0.0
    %1076 = vadd.xlane.f32.xlu0 %v1075
    %v1077 = vpop.xlane.xlu0 %1076
    %v1078 = vrot.slane %v1077, 4
    %v1079 = vadd.f32 %v1077, %v1078
    %v1080 = vrot.slane %v1079, 2
    %v1081 = vadd.f32 %v1079, %v1080
    %v1082 = vrot.slane %v1081, 1
    %v1083 = vadd.f32 %v1081, %v1082
    %s1084 = vtos %v1083
    %v1085 = vrcp.pop 128.0
    %s1086 = vtos %v1085
    %s1087 = smul.f32 %s1084, %s1086
    %v1088 = vsel %vm877, %v956, 0.0
    %v1089 = vrot.slane %v1088, 4
    %v1090 = vadd.f32 %v1088, %v1089
    %v1091 = vrot.slane %v1090, 2
    %v1092 = vadd.f32 %v1090, %v1091
    %v1093 = vrot.slane %v1092, 1
    %v1094 = vadd.f32 %v1092, %v1093
    %v1095 = vmul.f32 %v1094, %v885
    %v1096 = vsub.f32 %v956, %v1095
    %v1097 = vsel %vm877, %v1068, 0.0
    %v1098 = vrot.slane %v1097, 4
    %v1099 = vadd.f32 %v1097, %v1098
    %v1100 = vrot.slane %v1099, 2
    %v1101 = vadd.f32 %v1099, %v1100
    %v1102 = vrot.slane %v1101, 1
    %v1103 = vadd.f32 %v1101, %v1102
    %v1104 = vmul.f32 %v1103, %v885
    %v1105 = vsub.f32 %v1068, %v1104
    %v1106 = vmul.f32 %v1096, %v1096
    %v1107 = vsel %vm877, %v1106, 0.0
    %v1108 = vrot.slane %v1107, 4
    %v1109 = vadd.f32 %v1107, %v1108
    %v1110 = vrot.slane %v1109, 2
    %v1111 = vadd.f32 %v1109, %v1110
    %v1112 = vrot.slane %v1111, 1
    %v1113 = vadd.f32 %v1111, %v1112
    %v1114 = vrcp.pop 3.0
    %v1115 = vmul.f32 %v1113, %v1114
    %v1116 = vmul.f32 %v1105, %v1105
    %v1117 = vsel %vm877, %v1116, 0.0
    %v1118 = vrot.slane %v1117, 4
    %v1119 = vadd.f32 %v1117, %v1118
    %v1120 = vrot.slane %v1119, 2
    %v1121 = vadd.f32 %v1119, %v1120
    %v1122 = vrot.slane %v1121, 1
    %v1123 = vadd.f32 %v1121, %v1122
    %v1124 = vmul.f32 %v1123, %v1114
    %v1125 = vadd.f32 %v1115, 0.0001
    %v1126 = vrsqrt.pop %v1125
    %v1127 = vmul.f32 %v1125, %v1126
    %vm1128 = vcmp.eq.f32.partialorder %v1125, inf
    %v1129 = vsel %vm1128, %v1125, %v1127
    %vm1130 = vcmp.eq.f32.partialorder %v1125, 0.0
    %v1131 = vand.u32 %v1125, 2147483648
    %v1132 = vsel %vm1130, %v1131, %v1129
    %v1133 = vsub.f32 1.0, %v1132
    %v1134 = vmax.f32 %v1133, 0.0
    %vm1135 = vcmask 253952
    %v1136 = vsel %vm1135, %v1134, 0.0
    %1137 = vadd.xlane.f32.xlu0 %v1136
    %v1138 = vpop.xlane.xlu0 %1137
    %v1139 = vrot.slane %v1138, 4
    %v1140 = vadd.f32 %v1138, %v1139
    %v1141 = vrot.slane %v1140, 2
    %v1142 = vadd.f32 %v1140, %v1141
    %v1143 = vrot.slane %v1142, 1
    %v1144 = vadd.f32 %v1142, %v1143
    %s1145 = vtos %v1144
    %v1146 = vrcp.pop 32.0
    %s1147 = vtos %v1146
    %s1148 = smul.f32 %s1145, %s1147
    %v1149 = vrcp.pop 2.0
    %s1150 = vtos %v1149
    %s1151 = smul.f32 %s1148, %s1150
    %v1152 = vadd.f32 %v1124, 0.0001
    %v1153 = vrsqrt.pop %v1152
    %v1154 = vmul.f32 %v1152, %v1153
    %vm1155 = vcmp.eq.f32.partialorder %v1152, inf
    %v1156 = vsel %vm1155, %v1152, %v1154
    %vm1157 = vcmp.eq.f32.partialorder %v1152, 0.0
    %v1158 = vand.u32 %v1152, 2147483648
    %v1159 = vsel %vm1157, %v1158, %v1156
    %v1160 = vsub.f32 1.0, %v1159
    %v1161 = vmax.f32 %v1160, 0.0
    %v1162 = vsel %vm1135, %v1161, 0.0
    %1163 = vadd.xlane.f32.xlu0 %v1162
    %v1164 = vpop.xlane.xlu0 %1163
    %v1165 = vrot.slane %v1164, 4
    %v1166 = vadd.f32 %v1164, %v1165
    %v1167 = vrot.slane %v1166, 2
    %v1168 = vadd.f32 %v1166, %v1167
    %v1169 = vrot.slane %v1168, 1
    %v1170 = vadd.f32 %v1168, %v1169
    %s1171 = vtos %v1170
    %v1172 = vrcp.pop 32.0
    %s1173 = vtos %v1172
    %s1174 = smul.f32 %s1171, %s1173
    %v1175 = vrcp.pop 2.0
    %s1176 = vtos %v1175
    %s1177 = smul.f32 %s1174, %s1176
    %s1178 = sadd.f32 %s1151, %s1177
    %v1179 = vpack.c.bf16 %v1096, %v1096
    %v1180 = vpack.c.bf16 %v1105, %v1105
    %1181 = vxpose.xlu0.c.b16.start [1/8] %v1179, 128
    %1182 = vxpose.xlu0.c.b16.cont [2/8] 0, 128
    %1183 = vxpose.xlu0.c.b16.cont [3/8] 0, 128
    %1184 = vxpose.xlu0.c.b16.cont [4/8] 0, 128
    %1185 = vxpose.xlu0.c.b16.cont [5/8] 0, 128
    %1186 = vxpose.xlu0.c.b16.cont [6/8] 0, 128
    %1187 = vxpose.xlu0.c.b16.cont [7/8] 0, 128
    %1188 = vxpose.xlu0.c.b16.end [8/8] 0, 128
    %v1189 = vpop.trf.xlu0
    %v1190 = vpop.trf.xlu0
    %v1191 = vpop.trf.xlu0
    %v1192 = vpop.trf.xlu0
    %v1193 = vpop.trf.xlu0
    %v1194 = vpop.trf.xlu0
    %v1195 = vpop.trf.xlu0
    %v1196 = vpop.trf.xlu0
    %vm1197 = vcmask 31744
    %v1199 = vsel %vm1197, %v1189, 0
    %v1202 = vsel %vm1197, %v1190, 0
    %v1205 = vsel %vm399, %v1179, 0
    %1207 = vmatprep.subr.bf16.mxu0 0
    %1208 = vmatpush1.bf16.msra.mxu0 %v1205
    %1209 = vmatprep.subr.bf16.mxu0 0
    %1210 = vmatpush1.bf16.msra.mxu0 0
    %1211 = vmatprep.subr.bf16.mxu0 0
    %1212 = vmatpush1.bf16.msra.mxu0 0
    %1213 = vmatprep.subr.bf16.mxu0 0
    %1214 = vmatpush1.bf16.msra.mxu0 0
    %1215 = vmatprep.subr.bf16.mxu0 0
    %1216 = vmatpush1.bf16.msra.mxu0 0
    %1217 = vmatprep.subr.bf16.mxu0 0
    %1218 = vmatpush1.bf16.msra.mxu0 0
    %1219 = vmatprep.subr.bf16.mxu0 0
    %1220 = vmatpush1.bf16.msra.mxu0 0
    %1221 = vmatprep.subr.bf16.mxu0 0
    %1222 = vmatpush1.bf16.msra.mxu0 0
    %1223 = vmatprep.subr.bf16.mxu0 0
    %1224 = vmatpush1.bf16.msra.mxu0 0
    %1225 = vmatprep.subr.bf16.mxu0 0
    %1226 = vmatpush1.bf16.msra.mxu0 0
    %1227 = vmatprep.subr.bf16.mxu0 0
    %1228 = vmatpush1.bf16.msra.mxu0 0
    %1229 = vmatprep.subr.bf16.mxu0 0
    %1230 = vmatpush1.bf16.msra.mxu0 0
    %1231 = vmatprep.subr.bf16.mxu0 0
    %1232 = vmatpush1.bf16.msra.mxu0 0
    %1233 = vmatprep.subr.bf16.mxu0 0
    %1234 = vmatpush1.bf16.msra.mxu0 0
    %1235 = vmatprep.subr.bf16.mxu0 0
    %1236 = vmatpush1.bf16.msra.mxu0 0
    %1237 = vmatprep.subr.bf16.mxu0 0
    %1238 = vmatpush1.bf16.msra.mxu0 0
    %1239 = vmatprep.mubr.bf16.mxu0 0
    %1240 = vmatmul.mubr.bf16.gmra.mrb[0].mxu0 %v1199
    %v1241 = vpop.f32.mrb[0].mxu0
    %v1242 = vadd.f32 0.0, %v1241
    %v1243 = vpop.f32.mrb[0].mxu0
    %v1244 = vpop.f32.mrb[0].mxu0
    %v1245 = vadd.f32 0.0, %v1244
    %v1246 = vpop.f32.mrb[0].mxu0
    %1247 = vmatprep.mubr.bf16.mxu0 0
    %1248 = vmatmul.mubr.bf16.gmra.mrb[0].mxu0 %v1202
    %v1249 = vpop.f32.mrb[0].mxu0
    %v1250 = vadd.f32 0.0, %v1249
    %v1251 = vpop.f32.mrb[0].mxu0
    %v1252 = vpop.f32.mrb[0].mxu0
    %v1253 = vadd.f32 0.0, %v1252
    %v1254 = vpop.f32.mrb[0].mxu0
    %1255 = vdwg.mxu0
    %v1256 = vmul.f32 %v1242, %v1114
    %v1257 = vmul.f32 %v1245, %v1114
    %v1258 = vmul.f32 %v1250, %v1114
    %v1259 = vmul.f32 %v1253, %v1114
    %1260 = vxpose.xlu0.c.b16.start [1/8] %v1180, 128
    %1261 = vxpose.xlu0.c.b16.cont [2/8] 0, 128
    %1262 = vxpose.xlu0.c.b16.cont [3/8] 0, 128
    %1263 = vxpose.xlu0.c.b16.cont [4/8] 0, 128
    %1264 = vxpose.xlu0.c.b16.cont [5/8] 0, 128
    %1265 = vxpose.xlu0.c.b16.cont [6/8] 0, 128
    %1266 = vxpose.xlu0.c.b16.cont [7/8] 0, 128
    %1267 = vxpose.xlu0.c.b16.end [8/8] 0, 128
    %v1268 = vpop.trf.xlu0
    %v1269 = vpop.trf.xlu0
    %v1270 = vpop.trf.xlu0
    %v1271 = vpop.trf.xlu0
    %v1272 = vpop.trf.xlu0
    %v1273 = vpop.trf.xlu0
    %v1274 = vpop.trf.xlu0
    %v1275 = vpop.trf.xlu0
    %v1277 = vsel %vm1197, %v1268, 0
    %v1280 = vsel %vm1197, %v1269, 0
    %v1283 = vsel %vm399, %v1180, 0
    %1285 = vmatprep.subr.bf16.mxu0 0
    %1286 = vmatpush1.bf16.msra.mxu0 %v1283
    %1287 = vmatprep.subr.bf16.mxu0 0
    %1288 = vmatpush1.bf16.msra.mxu0 0
    %1289 = vmatprep.subr.bf16.mxu0 0
    %1290 = vmatpush1.bf16.msra.mxu0 0
    %1291 = vmatprep.subr.bf16.mxu0 0
    %1292 = vmatpush1.bf16.msra.mxu0 0
    %1293 = vmatprep.subr.bf16.mxu0 0
    %1294 = vmatpush1.bf16.msra.mxu0 0
    %1295 = vmatprep.subr.bf16.mxu0 0
    %1296 = vmatpush1.bf16.msra.mxu0 0
    %1297 = vmatprep.subr.bf16.mxu0 0
    %1298 = vmatpush1.bf16.msra.mxu0 0
    %1299 = vmatprep.subr.bf16.mxu0 0
    %1300 = vmatpush1.bf16.msra.mxu0 0
    %1301 = vmatprep.subr.bf16.mxu0 0
    %1302 = vmatpush1.bf16.msra.mxu0 0
    %1303 = vmatprep.subr.bf16.mxu0 0
    %1304 = vmatpush1.bf16.msra.mxu0 0
    %1305 = vmatprep.subr.bf16.mxu0 0
    %1306 = vmatpush1.bf16.msra.mxu0 0
    %1307 = vmatprep.subr.bf16.mxu0 0
    %1308 = vmatpush1.bf16.msra.mxu0 0
    %1309 = vmatprep.subr.bf16.mxu0 0
    %1310 = vmatpush1.bf16.msra.mxu0 0
    %1311 = vmatprep.subr.bf16.mxu0 0
    %1312 = vmatpush1.bf16.msra.mxu0 0
    %1313 = vmatprep.subr.bf16.mxu0 0
    %1314 = vmatpush1.bf16.msra.mxu0 0
    %1315 = vmatprep.subr.bf16.mxu0 0
    %1316 = vmatpush1.bf16.msra.mxu0 0
    %1317 = vmatprep.mubr.bf16.mxu0 0
    %1318 = vmatmul.mubr.bf16.gmra.mrb[0].mxu0 %v1277
    %v1319 = vpop.f32.mrb[0].mxu0
    %v1320 = vadd.f32 0.0, %v1319
    %v1321 = vpop.f32.mrb[0].mxu0
    %v1322 = vpop.f32.mrb[0].mxu0
    %v1323 = vadd.f32 0.0, %v1322
    %v1324 = vpop.f32.mrb[0].mxu0
    %1325 = vmatprep.mubr.bf16.mxu0 0
    %1326 = vmatmul.mubr.bf16.gmra.mrb[0].mxu0 %v1280
    %v1327 = vpop.f32.mrb[0].mxu0
    %v1328 = vadd.f32 0.0, %v1327
    %v1329 = vpop.f32.mrb[0].mxu0
    %v1330 = vpop.f32.mrb[0].mxu0
    %v1331 = vadd.f32 0.0, %v1330
    %v1332 = vpop.f32.mrb[0].mxu0
    %1333 = vdwg.mxu0
    %v1334 = vmul.f32 %v1320, %v1114
    %v1335 = vmul.f32 %v1323, %v1114
    %v1336 = vmul.f32 %v1328, %v1114
    %v1337 = vmul.f32 %v1331, %v1114
    %v1338 = vunpack.c.l.bf16 %v1179
    %v1339 = vmul.f32 %v1338, %v1338
    %v1340 = vsel %vm877, %v1339, 0.0
    %v1341 = vrot.slane %v1340, 4
    %v1342 = vadd.f32 %v1340, %v1341
    %v1343 = vrot.slane %v1342, 2
    %v1344 = vadd.f32 %v1342, %v1343
    %v1345 = vrot.slane %v1344, 1
    %v1346 = vadd.f32 %v1344, %v1345
    %v1347 = vmul.f32 %v1346, %v1114
    %v1348 = vunpack.c.l.bf16 %v1180
    %v1349 = vmul.f32 %v1348, %v1348
    %v1350 = vsel %vm877, %v1349, 0.0
    %v1351 = vrot.slane %v1350, 4
    %v1352 = vadd.f32 %v1350, %v1351
    %v1353 = vrot.slane %v1352, 2
    %v1354 = vadd.f32 %v1352, %v1353
    %v1355 = vrot.slane %v1354, 1
    %v1356 = vadd.f32 %v1354, %v1355
    %v1357 = vmul.f32 %v1356, %v1114
    %v1358 = vmul.f32 %v1256, %v1256
    %v1359 = vmul.f32 %v1257, %v1257
    %v1360 = vmul.f32 %v1258, %v1258
    %v1361 = vmul.f32 %v1259, %v1259
    %v1362 = vsel %vm833, %v1358, 0.0
    %v1363 = vsel %vm833, %v1359, 0.0
    %v1364 = vadd.f32 %v1362, %v1363
    %v1365 = vsel %vm833, %v1360, 0.0
    %v1366 = vadd.f32 %v1364, %v1365
    %v1367 = vsel %vm833, %v1361, 0.0
    %v1368 = vadd.f32 %v1366, %v1367
    %1369 = vadd.xlane.f32.xlu0 %v1368
    %v1370 = vpop.xlane.xlu0 %1369
    %v1371 = vrot.slane %v1370, 4
    %v1372 = vadd.f32 %v1370, %v1371
    %v1373 = vrot.slane %v1372, 2
    %v1374 = vadd.f32 %v1372, %v1373
    %v1375 = vrot.slane %v1374, 1
    %v1376 = vadd.f32 %v1374, %v1375
    %s1377 = vtos %v1376
    %v1378 = vmul.f32 %v1347, %v1347
    %v1379 = vsel %vm1135, %v1378, 0.0
    %1380 = vadd.xlane.f32.xlu0 %v1379
    %v1381 = vpop.xlane.xlu0 %1380
    %v1382 = vrot.slane %v1381, 4
    %v1383 = vadd.f32 %v1381, %v1382
    %v1384 = vrot.slane %v1383, 2
    %v1385 = vadd.f32 %v1383, %v1384
    %v1386 = vrot.slane %v1385, 1
    %v1387 = vadd.f32 %v1385, %v1386
    %s1388 = vtos %v1387
    %s1389 = ssub.f32 %s1377, %s1388
    %v1390 = vmul.f32 %v1334, %v1334
    %v1391 = vmul.f32 %v1335, %v1335
    %v1392 = vmul.f32 %v1336, %v1336
    %v1393 = vmul.f32 %v1337, %v1337
    %v1394 = vsel %vm833, %v1390, 0.0
    %v1395 = vsel %vm833, %v1391, 0.0
    %v1396 = vadd.f32 %v1394, %v1395
    %v1397 = vsel %vm833, %v1392, 0.0
    %v1398 = vadd.f32 %v1396, %v1397
    %v1399 = vsel %vm833, %v1393, 0.0
    %v1400 = vadd.f32 %v1398, %v1399
    %1401 = vadd.xlane.f32.xlu0 %v1400
    %v1402 = vpop.xlane.xlu0 %1401
    %v1403 = vrot.slane %v1402, 4
    %v1404 = vadd.f32 %v1402, %v1403
    %v1405 = vrot.slane %v1404, 2
    %v1406 = vadd.f32 %v1404, %v1405
    %v1407 = vrot.slane %v1406, 1
    %v1408 = vadd.f32 %v1406, %v1407
    %s1409 = vtos %v1408
    %v1410 = vmul.f32 %v1357, %v1357
    %v1411 = vsel %vm1135, %v1410, 0.0
    %1412 = vadd.xlane.f32.xlu0 %v1411
    %v1413 = vpop.xlane.xlu0 %1412
    %v1414 = vrot.slane %v1413, 4
    %v1415 = vadd.f32 %v1413, %v1414
    %v1416 = vrot.slane %v1415, 2
    %v1417 = vadd.f32 %v1415, %v1416
    %v1418 = vrot.slane %v1417, 1
    %v1419 = vadd.f32 %v1417, %v1418
    %s1420 = vtos %v1419
    %s1421 = ssub.f32 %s1409, %s1420
    %v1422 = vrcp.pop 32.0
    %s1423 = vtos %v1422
    %s1424 = smul.f32 %s1389, %s1423
    %v1425 = vrcp.pop 32.0
    %s1426 = vtos %v1425
    %s1427 = smul.f32 %s1421, %s1426
    %s1428 = sadd.f32 %s1424, %s1427
    %s1429 = smul.f32 %s1087, 25.0
    %s1430 = smul.f32 %s1178, 25.0
    %s1431 = sadd.f32 %s1429, %s1430
    %s1432 = sadd.f32 %s1431, %s1428
    %s1433 = scalar_lea.smem [#allocation5], 0
    %1434 = sst [smem:[%s1433]] %s1432
    // Predicated region
    $region98: #{tpu_custom_call.1} parent=1 // pred_check
      _
    $region99: #{tpu_custom_call.1} parent=1 // pred_check_branch
      %1436 = sbr.rel (0) target = $region101
    $region100: #{tpu_custom_call.1} parent=1 // pred_region
      %s1438 = ssub.s32 16, 16
      %1439 = vsyncadd [#allocation4], %s1438
      %1442 = dma.smem_to_hbm [#allocation5], 16, %s23, [#allocation4]
    $region101: #{tpu_custom_call.1} parent=1 // pred_fallthru
      _
    // Predicated region
    $region102: #{tpu_custom_call.1} parent=1 // pred_check
      _
    $region103: #{tpu_custom_call.1} parent=1 // pred_check_branch
      %1444 = sbr.rel (0) target = $region105
    $region104: #{tpu_custom_call.1} parent=1 // pred_region
      %1445 = dma.done [#allocation4], 16
    $region105: #{tpu_custom_call.1} parent=1 // pred_fallthru
      _
    %1446 = sfence
    %1447 = vsyncpa [#allocation3], 1
    %1448 = vsyncpa [#allocation4], 1

</llo_original>
